<compile_context>
chip_gen: v6e
topology: v6e:2x2x1
jax: 0.10.0
libtpu: 0.0.40
codegen_flags: <defaults>
</compile_context>

<pallas_src>
import functools

import numpy as np

import jax
import jax.numpy as jnp
from jax import lax
from jax.experimental import pallas as pl
from jax.experimental.pallas import tpu as pltpu

_VMEM = pl.BlockSpec(memory_space=pltpu.MemorySpace.VMEM)

_HP = 128          # padded, view-concatenated hidden width (3*H=96 -> 128)


# ----------------------------------------------------------------------------
# One fused kernel: batched 3-view GRU recurrence (masked mean over time),
# folded linear head, sigmoid, squared-error loss.
# ----------------------------------------------------------------------------
def fused_model_kernel(x_ref, mask_ref, wih_ref, whh_ref, bias_ref,
                       whead_ref, scal_ref, out_ref):
    T = x_ref.shape[0]            # static (max sequence length, 8)
    HP = whh_ref.shape[0]         # 128

    w_hh = whh_ref[...]           # (HP, 3*HP) bf16, block-diagonal per gate
    b_ih = bias_ref[0:1, :]       # (1, 3*HP) f32
    b_hh = bias_ref[1:2, :]       # (1, 3*HP) f32
    mask = mask_ref[...]          # (T, HP)   f32, includes 1/T_v scaling
    scal = scal_ref[...]          # (1, 2)    f32: [b_head, label]

    # Hoisted input projection for all views and all timesteps in ONE MXU op:
    # (T, 832) @ (832, 384) with bf16 operands, f32 accumulate.
    gi = jnp.dot(x_ref[...].astype(jnp.bfloat16), wih_ref[...],
                 preferred_element_type=jnp.float32) + b_ih          # (T, 3*HP)

    h = jnp.zeros((1, HP), jnp.float32)
    acc = jnp.zeros((1, HP), jnp.float32)
    # Fully unrolled static recurrence: one (1,HP)@(HP,3HP) bf16 MXU op per
    # step; gate math on vreg-aligned 128-lane slabs in f32.
    for t in range(T):
        gi_t = gi[t:t + 1, :]                                        # (1, 3*HP)
        gh = jnp.dot(h.astype(jnp.bfloat16), w_hh,
                     preferred_element_type=jnp.float32) + b_hh      # (1, 3*HP)
        r = jax.nn.sigmoid(gi_t[:, 0:HP] + gh[:, 0:HP])
        z = jax.nn.sigmoid(gi_t[:, HP:2 * HP] + gh[:, HP:2 * HP])
        n = jnp.tanh(gi_t[:, 2 * HP:3 * HP] + r * gh[:, 2 * HP:3 * HP])
        h = (1.0 - z) * n + z * h
        acc = acc + mask[t:t + 1, :] * h          # masked, pre-scaled mean

    # Folded head: per-view Linear + concat + output Linear == one vector dot.
    logit = jnp.sum(acc * whead_ref[...], axis=1, keepdims=True) + scal[:, 0:1]
    result = jax.nn.sigmoid(logit)                                    # (1, 1)
    loss = (scal[:, 1:2] - result) ** 2                               # (1, 1)
    out_ref[:, 0:1] = result
    out_ref[:, 1:2] = loss


# ----------------------------------------------------------------------------
# One-time PyTorch-layout -> fused kernel-layout weight packing.
# ----------------------------------------------------------------------------
def prepare_kernel_params(params):
    H = params["linear"][0].shape[0]
    HP = _HP
    assert 3 * H <= HP, "padded hidden width too small"
    G3 = 3 * HP

    # view order matches multi_view concat order: content, reply, bert
    views = [("gru_content", 0), ("gru_reply", H), ("gru_bert", 2 * H)]

    # feature-row layout of the packed x slab: [content | reply | bert]
    row_off, total_rows = [], 0
    for name, _ in views:
        E = np.asarray(params[name][0]).shape[1]
        row_off.append((total_rows, E))
        total_rows += E

    w_ih_all = np.zeros((total_rows, G3), np.float32)
    w_hh_all = np.zeros((HP, G3), np.float32)
    b_ih_all = np.zeros((1, G3), np.float32)
    b_hh_all = np.zeros((1, G3), np.float32)

    for (name, ov), (r0, E) in zip(views, row_off):
        w_ih, w_hh, b_ih, b_hh = [np.asarray(a) for a in params[name]]
        for g in range(3):                       # PyTorch gate order r | z | n
            c0 = g * HP + ov
            w_ih_all[r0:r0 + E, c0:c0 + H] = w_ih[g * H:(g + 1) * H, :].T
            w_hh_all[ov:ov + H, c0:c0 + H] = w_hh[g * H:(g + 1) * H, :].T
            b_ih_all[0, c0:c0 + H] = b_ih[g * H:(g + 1) * H]
            b_hh_all[0, c0:c0 + H] = b_hh[g * H:(g + 1) * H]

    # Fold per-view Linear + concat + output Linear into (w_head, b_head).
    w_out, b_out = [np.asarray(a) for a in params["output_linear"]]   # (1,3H),(1,)
    lin_for_view = {"gru_content": "content_linear",
                    "gru_reply": "linear",
                    "gru_bert": "linear"}
    w_head = np.zeros((1, HP), np.float32)
    b_head = float(b_out[0])
    for i, (name, ov) in enumerate(views):
        w_lin, b_lin = [np.asarray(a) for a in params[lin_for_view[name]]]
        w_out_v = w_out[0, i * H:(i + 1) * H]                         # (H,)
        w_head[0, ov:ov + H] = w_lin.T @ w_out_v
        b_head += float(b_lin @ w_out_v)

    return {
        "w_ih": jnp.asarray(w_ih_all, jnp.bfloat16),       # (sum_E, 384)
        "w_hh": jnp.asarray(w_hh_all, jnp.bfloat16),       # (128, 384)
        "biases": jnp.asarray(np.concatenate([b_ih_all, b_hh_all], 0)),  # (2,384)
        "w_head": jnp.asarray(w_head, jnp.float32),        # (1, 128)
        "b_head": jnp.asarray([b_head], jnp.float32),      # (1,)
    }


@functools.partial(jax.jit, static_argnames=("hidden_dim",))
def model_forward(kparams, x_content, x_reply, x_bert, label, *, hidden_dim):
    H, HP = hidden_dim, _HP
    Tc, Tr, Tb = x_content.shape[0], x_reply.shape[0], x_bert.shape[0]
    T = max(Tc, Tr, Tb)

    def pad_t(x):
        return jnp.pad(x, ((0, T - x.shape[0]), (0, 0)))

    # Packed input slab (T, E_c + E_r + E_b); shorter views zero-padded in time
    # (their hidden keeps evolving but is excluded from the mean by the mask).
    x_all = jnp.concatenate([pad_t(x_content), pad_t(x_reply), pad_t(x_bert)],
                            axis=1).astype(jnp.float32)

    # Per-step accumulation mask with 1/T_v folded in (compile-time constant).
    mask_np = np.zeros((T, HP), np.float32)
    for v, Tv in enumerate((Tc, Tr, Tb)):
        mask_np[:Tv, v * H:(v + 1) * H] = 1.0 / Tv
    masks = jnp.asarray(mask_np)

    scalars = jnp.concatenate(
        [kparams["b_head"].reshape(1), label.reshape(1)]
    ).reshape(1, 2).astype(jnp.float32)

    out = pl.pallas_call(
        fused_model_kernel,
        out_shape=jax.ShapeDtypeStruct((1, 2), jnp.float32),
        in_specs=[_VMEM] * 7,
        out_specs=_VMEM,
    )(x_all, masks, kparams["w_ih"], kparams["w_hh"], kparams["biases"],
      kparams["w_head"], scalars)

    result = out[0, 0:1]
    loss = out[0, 1:2]
    return loss, result


# ----------------------------------------------------------------------------
# Pure-JAX reference (same math, no Pallas) for a correctness check.
# ----------------------------------------------------------------------------
def _ref_gru_view(x, w_ih, w_hh, b_ih, b_hh, w_lin, b_lin):
    H = w_hh.shape[1]

    def cell(h, x_t):
        gi = w_ih @ x_t + b_ih
        gh = w_hh @ h + b_hh
        r = jax.nn.sigmoid(gi[:H] + gh[:H])
        z = jax.nn.sigmoid(gi[H:2 * H] + gh[H:2 * H])
        n = jnp.tanh(gi[2 * H:] + r * gh[2 * H:])
        h_new = (1.0 - z) * n + z * h
        return h_new, h_new

    _, hs = lax.scan(cell, jnp.zeros((H,), jnp.float32), x)
    out = hs @ w_lin.T + b_lin          # Linear per timestep (PyTorch order)
    return out.mean(axis=0)             # sum(0) / size(0)


def _ref_forward(params, x_content, x_reply, x_bert, label):
    vc = _ref_gru_view(x_content, *params["gru_content"], *params["content_linear"])
    vr = _ref_gru_view(x_reply, *params["gru_reply"], *params["linear"])
    vb = _ref_gru_view(x_bert, *params["gru_bert"], *params["linear"])
    mv = jnp.concatenate([vc, vr, vb])                       # (3H,)
    w_out, b_out = params["output_linear"]
    result = jax.nn.sigmoid(w_out @ mv + b_out)              # (1,)
    loss = (label - result) ** 2
    return loss, result


# ----------------------------------------------------------------------------
# Deterministic parameter / input construction (PyTorch layouts)
# ----------------------------------------------------------------------------
def _uniform(key, shape, scale):
    return jax.random.uniform(key, shape, jnp.float32, -scale, scale)


def make_params(key, embedding_dim, hidden_dim, bert_dim, multi_view_num):
    H = hidden_dim
    ks = iter(jax.random.split(key, 32))
    s = 1.0 / jnp.sqrt(H)

    def gru(in_dim):
        return (_uniform(next(ks), (3 * H, in_dim), s),
                _uniform(next(ks), (3 * H, H), s),
                _uniform(next(ks), (3 * H,), s),
                _uniform(next(ks), (3 * H,), s))

    def lin(in_dim, out_dim):
        si = 1.0 / jnp.sqrt(in_dim)
        return (_uniform(next(ks), (out_dim, in_dim), si),
                _uniform(next(ks), (out_dim,), si))

    return {
        "gru_content": gru(embedding_dim),
        "gru_reply": gru(embedding_dim),
        "gru_bert": gru(bert_dim),
        "linear": lin(H, H),
        "content_linear": lin(H, H),
        "output_linear": lin(multi_view_num * 1 * H, 1),   # batch_size = 1
    }


if __name__ == "__main__":
    EMB, HID, BERT = 32, 32, 768
    T_CONTENT, T_REPLY, T_BERT = 8, 6, 4

    root = jax.random.PRNGKey(0)
    k_p, k_c, k_r, k_b = jax.random.split(root, 4)

    params = make_params(k_p, EMB, HID, BERT, multi_view_num=3)
    kparams = prepare_kernel_params(params)    # one-time weight re-layout

    x_content = jax.random.normal(k_c, (T_CONTENT, EMB), jnp.float32)
    x_reply = jax.random.normal(k_r, (T_REPLY, EMB), jnp.float32)
    x_bert = jax.random.normal(k_b, (T_BERT, BERT), jnp.float32)
    label = jnp.array([1.0], jnp.float32)

    loss, result = jax.block_until_ready(
        model_forward(kparams, x_content, x_reply, x_bert, label, hidden_dim=HID))

    ref_loss, ref_result = _ref_forward(params, x_content, x_reply, x_bert, label)
    assert jnp.allclose(result, ref_result, rtol=5e-2, atol=1e-2), (result, ref_result)
    assert jnp.allclose(loss, ref_loss, rtol=5e-2, atol=1e-2), (loss, ref_loss)
    assert loss.shape == (1,) and result.shape == (1,)

    # TODO(synk): the Attention(args) branch (content_attention/attention=True)
    # is not defined in the provided source; the mean-pooling branch is implemented.
    print("KERNEL_OK")
</pallas_src>

<mosaic_0001>
module attributes {stable_mosaic.version = 11 : i64} {
  func.func @fused_model_kernel(%arg0: memref<8x832xf32, #tpu.memory_space<vmem>>, %arg1: memref<8x128xf32, #tpu.memory_space<vmem>>, %arg2: memref<832x384xbf16, #tpu.memory_space<vmem>>, %arg3: memref<128x384xbf16, #tpu.memory_space<vmem>>, %arg4: memref<2x384xf32, #tpu.memory_space<vmem>>, %arg5: memref<1x128xf32, #tpu.memory_space<vmem>>, %arg6: memref<1x2xf32, #tpu.memory_space<vmem>>, %arg7: memref<1x2xf32, #tpu.memory_space<vmem>>) attributes {dimension_semantics = [], scalar_prefetch = 0 : i64, scratch_operands = 0 : i64, tpu.core_type = #tpu.core_type<tc>} {
    %c0 = arith.constant 0 : index
    %c0_0 = arith.constant 0 : index
    %0 = vector.load %arg3[%c0, %c0_0] : memref<128x384xbf16, #tpu.memory_space<vmem>>, vector<128x384xbf16>
    %c0_1 = arith.constant 0 : index
    %c0_2 = arith.constant 0 : index
    %1 = vector.load %arg4[%c0_1, %c0_2] : memref<2x384xf32, #tpu.memory_space<vmem>>, vector<1x384xf32>
    %c1 = arith.constant 1 : index
    %c0_3 = arith.constant 0 : index
    %2 = vector.load %arg4[%c1, %c0_3] : memref<2x384xf32, #tpu.memory_space<vmem>>, vector<1x384xf32>
    %c0_4 = arith.constant 0 : index
    %c0_5 = arith.constant 0 : index
    %3 = vector.load %arg1[%c0_4, %c0_5] : memref<8x128xf32, #tpu.memory_space<vmem>>, vector<8x128xf32>
    %c0_6 = arith.constant 0 : index
    %c0_7 = arith.constant 0 : index
    %4 = vector.load %arg6[%c0_6, %c0_7] : memref<1x2xf32, #tpu.memory_space<vmem>>, vector<1x2xf32>
    %c0_8 = arith.constant 0 : index
    %c0_9 = arith.constant 0 : index
    %5 = vector.load %arg0[%c0_8, %c0_9] : memref<8x832xf32, #tpu.memory_space<vmem>>, vector<8x832xf32>
    %6 = arith.truncf %5 : vector<8x832xf32> to vector<8x832xbf16>
    %c0_10 = arith.constant 0 : index
    %c0_11 = arith.constant 0 : index
    %7 = vector.load %arg2[%c0_10, %c0_11] : memref<832x384xbf16, #tpu.memory_space<vmem>>, vector<832x384xbf16>
    %cst = arith.constant dense<0.000000e+00> : vector<8x384xf32>
    %8 = tpu.matmul %6, %7, %cst {dimension_numbers = #tpu.dot_dimension_numbers<[1], [0], [0], [1], [0, 0, 1, 1], [], []>} : vector<8x832xbf16>, vector<832x384xbf16>, vector<8x384xf32> -> vector<8x384xf32>
    %9 = vector.broadcast %1 : vector<1x384xf32> to vector<8x384xf32>
    %10 = arith.addf %8, %9 : vector<8x384xf32>
    %cst_12 = arith.constant 0.000000e+00 : f32
    %11 = vector.broadcast %cst_12 : f32 to vector<1x128xf32>
    %cst_13 = arith.constant 0.000000e+00 : f32
    %12 = vector.broadcast %cst_13 : f32 to vector<1x128xf32>
    %13 = vector.extract_strided_slice %10 {offsets = [0, 0], sizes = [1, 384], strides = [1, 1]} : vector<8x384xf32> to vector<1x384xf32>
    %14 = arith.truncf %11 : vector<1x128xf32> to vector<1x128xbf16>
    %cst_14 = arith.constant dense<0.000000e+00> : vector<1x384xf32>
    %15 = tpu.matmul %14, %0, %cst_14 {dimension_numbers = #tpu.dot_dimension_numbers<[1], [0], [0], [1], [0, 0, 1, 1], [], []>} : vector<1x128xbf16>, vector<128x384xbf16>, vector<1x384xf32> -> vector<1x384xf32>
    %16 = arith.addf %15, %2 : vector<1x384xf32>
    %17 = vector.extract_strided_slice %13 {offsets = [0, 0], sizes = [1, 128], strides = [1, 1]} : vector<1x384xf32> to vector<1x128xf32>
    %18 = vector.extract_strided_slice %16 {offsets = [0, 0], sizes = [1, 128], strides = [1, 1]} : vector<1x384xf32> to vector<1x128xf32>
    %19 = arith.addf %17, %18 : vector<1x128xf32>
    %20 = arith.negf %19 : vector<1x128xf32>
    %21 = math.exp %20 : vector<1x128xf32>
    %cst_15 = arith.constant 1.000000e+00 : f32
    %22 = vector.broadcast %cst_15 : f32 to vector<1x128xf32>
    %23 = arith.addf %22, %21 : vector<1x128xf32>
    %24 = arith.divf %22, %23 : vector<1x128xf32>
    %25 = vector.extract_strided_slice %13 {offsets = [0, 128], sizes = [1, 128], strides = [1, 1]} : vector<1x384xf32> to vector<1x128xf32>
    %26 = vector.extract_strided_slice %16 {offsets = [0, 128], sizes = [1, 128], strides = [1, 1]} : vector<1x384xf32> to vector<1x128xf32>
    %27 = arith.addf %25, %26 : vector<1x128xf32>
    %28 = arith.negf %27 : vector<1x128xf32>
    %29 = math.exp %28 : vector<1x128xf32>
    %cst_16 = arith.constant 1.000000e+00 : f32
    %30 = vector.broadcast %cst_16 : f32 to vector<1x128xf32>
    %31 = arith.addf %30, %29 : vector<1x128xf32>
    %32 = arith.divf %30, %31 : vector<1x128xf32>
    %33 = vector.extract_strided_slice %13 {offsets = [0, 256], sizes = [1, 128], strides = [1, 1]} : vector<1x384xf32> to vector<1x128xf32>
    %34 = vector.extract_strided_slice %16 {offsets = [0, 256], sizes = [1, 128], strides = [1, 1]} : vector<1x384xf32> to vector<1x128xf32>
    %35 = arith.mulf %24, %34 : vector<1x128xf32>
    %36 = arith.addf %33, %35 : vector<1x128xf32>
    %37 = math.tanh %36 : vector<1x128xf32>
    %cst_17 = arith.constant 1.000000e+00 : f32
    %38 = vector.broadcast %cst_17 : f32 to vector<1x128xf32>
    %39 = arith.subf %38, %32 : vector<1x128xf32>
    %40 = arith.mulf %39, %37 : vector<1x128xf32>
    %41 = arith.mulf %32, %11 : vector<1x128xf32>
    %42 = arith.addf %40, %41 : vector<1x128xf32>
    %43 = vector.extract_strided_slice %3 {offsets = [0, 0], sizes = [1, 128], strides = [1, 1]} : vector<8x128xf32> to vector<1x128xf32>
    %44 = arith.mulf %43, %42 : vector<1x128xf32>
    %45 = arith.addf %12, %44 : vector<1x128xf32>
    %46 = vector.extract_strided_slice %10 {offsets = [1, 0], sizes = [1, 384], strides = [1, 1]} : vector<8x384xf32> to vector<1x384xf32>
    %47 = arith.truncf %42 : vector<1x128xf32> to vector<1x128xbf16>
    %cst_18 = arith.constant dense<0.000000e+00> : vector<1x384xf32>
    %48 = tpu.matmul %47, %0, %cst_18 {dimension_numbers = #tpu.dot_dimension_numbers<[1], [0], [0], [1], [0, 0, 1, 1], [], []>} : vector<1x128xbf16>, vector<128x384xbf16>, vector<1x384xf32> -> vector<1x384xf32>
    %49 = arith.addf %48, %2 : vector<1x384xf32>
    %50 = vector.extract_strided_slice %46 {offsets = [0, 0], sizes = [1, 128], strides = [1, 1]} : vector<1x384xf32> to vector<1x128xf32>
    %51 = vector.extract_strided_slice %49 {offsets = [0, 0], sizes = [1, 128], strides = [1, 1]} : vector<1x384xf32> to vector<1x128xf32>
    %52 = arith.addf %50, %51 : vector<1x128xf32>
    %53 = arith.negf %52 : vector<1x128xf32>
    %54 = math.exp %53 : vector<1x128xf32>
    %cst_19 = arith.constant 1.000000e+00 : f32
    %55 = vector.broadcast %cst_19 : f32 to vector<1x128xf32>
    %56 = arith.addf %55, %54 : vector<1x128xf32>
    %57 = arith.divf %55, %56 : vector<1x128xf32>
    %58 = vector.extract_strided_slice %46 {offsets = [0, 128], sizes = [1, 128], strides = [1, 1]} : vector<1x384xf32> to vector<1x128xf32>
    %59 = vector.extract_strided_slice %49 {offsets = [0, 128], sizes = [1, 128], strides = [1, 1]} : vector<1x384xf32> to vector<1x128xf32>
    %60 = arith.addf %58, %59 : vector<1x128xf32>
    %61 = arith.negf %60 : vector<1x128xf32>
    %62 = math.exp %61 : vector<1x128xf32>
    %cst_20 = arith.constant 1.000000e+00 : f32
    %63 = vector.broadcast %cst_20 : f32 to vector<1x128xf32>
    %64 = arith.addf %63, %62 : vector<1x128xf32>
    %65 = arith.divf %63, %64 : vector<1x128xf32>
    %66 = vector.extract_strided_slice %46 {offsets = [0, 256], sizes = [1, 128], strides = [1, 1]} : vector<1x384xf32> to vector<1x128xf32>
    %67 = vector.extract_strided_slice %49 {offsets = [0, 256], sizes = [1, 128], strides = [1, 1]} : vector<1x384xf32> to vector<1x128xf32>
    %68 = arith.mulf %57, %67 : vector<1x128xf32>
    %69 = arith.addf %66, %68 : vector<1x128xf32>
    %70 = math.tanh %69 : vector<1x128xf32>
    %cst_21 = arith.constant 1.000000e+00 : f32
    %71 = vector.broadcast %cst_21 : f32 to vector<1x128xf32>
    %72 = arith.subf %71, %65 : vector<1x128xf32>
    %73 = arith.mulf %72, %70 : vector<1x128xf32>
    %74 = arith.mulf %65, %42 : vector<1x128xf32>
    %75 = arith.addf %73, %74 : vector<1x128xf32>
    %76 = vector.extract_strided_slice %3 {offsets = [1, 0], sizes = [1, 128], strides = [1, 1]} : vector<8x128xf32> to vector<1x128xf32>
    %77 = arith.mulf %76, %75 : vector<1x128xf32>
    %78 = arith.addf %45, %77 : vector<1x128xf32>
    %79 = vector.extract_strided_slice %10 {offsets = [2, 0], sizes = [1, 384], strides = [1, 1]} : vector<8x384xf32> to vector<1x384xf32>
    %80 = arith.truncf %75 : vector<1x128xf32> to vector<1x128xbf16>
    %cst_22 = arith.constant dense<0.000000e+00> : vector<1x384xf32>
    %81 = tpu.matmul %80, %0, %cst_22 {dimension_numbers = #tpu.dot_dimension_numbers<[1], [0], [0], [1], [0, 0, 1, 1], [], []>} : vector<1x128xbf16>, vector<128x384xbf16>, vector<1x384xf32> -> vector<1x384xf32>
    %82 = arith.addf %81, %2 : vector<1x384xf32>
    %83 = vector.extract_strided_slice %79 {offsets = [0, 0], sizes = [1, 128], strides = [1, 1]} : vector<1x384xf32> to vector<1x128xf32>
    %84 = vector.extract_strided_slice %82 {offsets = [0, 0], sizes = [1, 128], strides = [1, 1]} : vector<1x384xf32> to vector<1x128xf32>
    %85 = arith.addf %83, %84 : vector<1x128xf32>
    %86 = arith.negf %85 : vector<1x128xf32>
    %87 = math.exp %86 : vector<1x128xf32>
    %cst_23 = arith.constant 1.000000e+00 : f32
    %88 = vector.broadcast %cst_23 : f32 to vector<1x128xf32>
    %89 = arith.addf %88, %87 : vector<1x128xf32>
    %90 = arith.divf %88, %89 : vector<1x128xf32>
    %91 = vector.extract_strided_slice %79 {offsets = [0, 128], sizes = [1, 128], strides = [1, 1]} : vector<1x384xf32> to vector<1x128xf32>
    %92 = vector.extract_strided_slice %82 {offsets = [0, 128], sizes = [1, 128], strides = [1, 1]} : vector<1x384xf32> to vector<1x128xf32>
    %93 = arith.addf %91, %92 : vector<1x128xf32>
    %94 = arith.negf %93 : vector<1x128xf32>
    %95 = math.exp %94 : vector<1x128xf32>
    %cst_24 = arith.constant 1.000000e+00 : f32
    %96 = vector.broadcast %cst_24 : f32 to vector<1x128xf32>
    %97 = arith.addf %96, %95 : vector<1x128xf32>
    %98 = arith.divf %96, %97 : vector<1x128xf32>
    %99 = vector.extract_strided_slice %79 {offsets = [0, 256], sizes = [1, 128], strides = [1, 1]} : vector<1x384xf32> to vector<1x128xf32>
    %100 = vector.extract_strided_slice %82 {offsets = [0, 256], sizes = [1, 128], strides = [1, 1]} : vector<1x384xf32> to vector<1x128xf32>
    %101 = arith.mulf %90, %100 : vector<1x128xf32>
    %102 = arith.addf %99, %101 : vector<1x128xf32>
    %103 = math.tanh %102 : vector<1x128xf32>
    %cst_25 = arith.constant 1.000000e+00 : f32
    %104 = vector.broadcast %cst_25 : f32 to vector<1x128xf32>
    %105 = arith.subf %104, %98 : vector<1x128xf32>
    %106 = arith.mulf %105, %103 : vector<1x128xf32>
    %107 = arith.mulf %98, %75 : vector<1x128xf32>
    %108 = arith.addf %106, %107 : vector<1x128xf32>
    %109 = vector.extract_strided_slice %3 {offsets = [2, 0], sizes = [1, 128], strides = [1, 1]} : vector<8x128xf32> to vector<1x128xf32>
    %110 = arith.mulf %109, %108 : vector<1x128xf32>
    %111 = arith.addf %78, %110 : vector<1x128xf32>
    %112 = vector.extract_strided_slice %10 {offsets = [3, 0], sizes = [1, 384], strides = [1, 1]} : vector<8x384xf32> to vector<1x384xf32>
    %113 = arith.truncf %108 : vector<1x128xf32> to vector<1x128xbf16>
    %cst_26 = arith.constant dense<0.000000e+00> : vector<1x384xf32>
    %114 = tpu.matmul %113, %0, %cst_26 {dimension_numbers = #tpu.dot_dimension_numbers<[1], [0], [0], [1], [0, 0, 1, 1], [], []>} : vector<1x128xbf16>, vector<128x384xbf16>, vector<1x384xf32> -> vector<1x384xf32>
    %115 = arith.addf %114, %2 : vector<1x384xf32>
    %116 = vector.extract_strided_slice %112 {offsets = [0, 0], sizes = [1, 128], strides = [1, 1]} : vector<1x384xf32> to vector<1x128xf32>
    %117 = vector.extract_strided_slice %115 {offsets = [0, 0], sizes = [1, 128], strides = [1, 1]} : vector<1x384xf32> to vector<1x128xf32>
    %118 = arith.addf %116, %117 : vector<1x128xf32>
    %119 = arith.negf %118 : vector<1x128xf32>
    %120 = math.exp %119 : vector<1x128xf32>
    %cst_27 = arith.constant 1.000000e+00 : f32
    %121 = vector.broadcast %cst_27 : f32 to vector<1x128xf32>
    %122 = arith.addf %121, %120 : vector<1x128xf32>
    %123 = arith.divf %121, %122 : vector<1x128xf32>
    %124 = vector.extract_strided_slice %112 {offsets = [0, 128], sizes = [1, 128], strides = [1, 1]} : vector<1x384xf32> to vector<1x128xf32>
    %125 = vector.extract_strided_slice %115 {offsets = [0, 128], sizes = [1, 128], strides = [1, 1]} : vector<1x384xf32> to vector<1x128xf32>
    %126 = arith.addf %124, %125 : vector<1x128xf32>
    %127 = arith.negf %126 : vector<1x128xf32>
    %128 = math.exp %127 : vector<1x128xf32>
    %cst_28 = arith.constant 1.000000e+00 : f32
    %129 = vector.broadcast %cst_28 : f32 to vector<1x128xf32>
    %130 = arith.addf %129, %128 : vector<1x128xf32>
    %131 = arith.divf %129, %130 : vector<1x128xf32>
    %132 = vector.extract_strided_slice %112 {offsets = [0, 256], sizes = [1, 128], strides = [1, 1]} : vector<1x384xf32> to vector<1x128xf32>
    %133 = vector.extract_strided_slice %115 {offsets = [0, 256], sizes = [1, 128], strides = [1, 1]} : vector<1x384xf32> to vector<1x128xf32>
    %134 = arith.mulf %123, %133 : vector<1x128xf32>
    %135 = arith.addf %132, %134 : vector<1x128xf32>
    %136 = math.tanh %135 : vector<1x128xf32>
    %cst_29 = arith.constant 1.000000e+00 : f32
    %137 = vector.broadcast %cst_29 : f32 to vector<1x128xf32>
    %138 = arith.subf %137, %131 : vector<1x128xf32>
    %139 = arith.mulf %138, %136 : vector<1x128xf32>
    %140 = arith.mulf %131, %108 : vector<1x128xf32>
    %141 = arith.addf %139, %140 : vector<1x128xf32>
    %142 = vector.extract_strided_slice %3 {offsets = [3, 0], sizes = [1, 128], strides = [1, 1]} : vector<8x128xf32> to vector<1x128xf32>
    %143 = arith.mulf %142, %141 : vector<1x128xf32>
    %144 = arith.addf %111, %143 : vector<1x128xf32>
    %145 = vector.extract_strided_slice %10 {offsets = [4, 0], sizes = [1, 384], strides = [1, 1]} : vector<8x384xf32> to vector<1x384xf32>
    %146 = arith.truncf %141 : vector<1x128xf32> to vector<1x128xbf16>
    %cst_30 = arith.constant dense<0.000000e+00> : vector<1x384xf32>
    %147 = tpu.matmul %146, %0, %cst_30 {dimension_numbers = #tpu.dot_dimension_numbers<[1], [0], [0], [1], [0, 0, 1, 1], [], []>} : vector<1x128xbf16>, vector<128x384xbf16>, vector<1x384xf32> -> vector<1x384xf32>
    %148 = arith.addf %147, %2 : vector<1x384xf32>
    %149 = vector.extract_strided_slice %145 {offsets = [0, 0], sizes = [1, 128], strides = [1, 1]} : vector<1x384xf32> to vector<1x128xf32>
    %150 = vector.extract_strided_slice %148 {offsets = [0, 0], sizes = [1, 128], strides = [1, 1]} : vector<1x384xf32> to vector<1x128xf32>
    %151 = arith.addf %149, %150 : vector<1x128xf32>
    %152 = arith.negf %151 : vector<1x128xf32>
    %153 = math.exp %152 : vector<1x128xf32>
    %cst_31 = arith.constant 1.000000e+00 : f32
    %154 = vector.broadcast %cst_31 : f32 to vector<1x128xf32>
    %155 = arith.addf %154, %153 : vector<1x128xf32>
    %156 = arith.divf %154, %155 : vector<1x128xf32>
    %157 = vector.extract_strided_slice %145 {offsets = [0, 128], sizes = [1, 128], strides = [1, 1]} : vector<1x384xf32> to vector<1x128xf32>
    %158 = vector.extract_strided_slice %148 {offsets = [0, 128], sizes = [1, 128], strides = [1, 1]} : vector<1x384xf32> to vector<1x128xf32>
    %159 = arith.addf %157, %158 : vector<1x128xf32>
    %160 = arith.negf %159 : vector<1x128xf32>
    %161 = math.exp %160 : vector<1x128xf32>
    %cst_32 = arith.constant 1.000000e+00 : f32
    %162 = vector.broadcast %cst_32 : f32 to vector<1x128xf32>
    %163 = arith.addf %162, %161 : vector<1x128xf32>
    %164 = arith.divf %162, %163 : vector<1x128xf32>
    %165 = vector.extract_strided_slice %145 {offsets = [0, 256], sizes = [1, 128], strides = [1, 1]} : vector<1x384xf32> to vector<1x128xf32>
    %166 = vector.extract_strided_slice %148 {offsets = [0, 256], sizes = [1, 128], strides = [1, 1]} : vector<1x384xf32> to vector<1x128xf32>
    %167 = arith.mulf %156, %166 : vector<1x128xf32>
    %168 = arith.addf %165, %167 : vector<1x128xf32>
    %169 = math.tanh %168 : vector<1x128xf32>
    %cst_33 = arith.constant 1.000000e+00 : f32
    %170 = vector.broadcast %cst_33 : f32 to vector<1x128xf32>
    %171 = arith.subf %170, %164 : vector<1x128xf32>
    %172 = arith.mulf %171, %169 : vector<1x128xf32>
    %173 = arith.mulf %164, %141 : vector<1x128xf32>
    %174 = arith.addf %172, %173 : vector<1x128xf32>
    %175 = vector.extract_strided_slice %3 {offsets = [4, 0], sizes = [1, 128], strides = [1, 1]} : vector<8x128xf32> to vector<1x128xf32>
    %176 = arith.mulf %175, %174 : vector<1x128xf32>
    %177 = arith.addf %144, %176 : vector<1x128xf32>
    %178 = vector.extract_strided_slice %10 {offsets = [5, 0], sizes = [1, 384], strides = [1, 1]} : vector<8x384xf32> to vector<1x384xf32>
    %179 = arith.truncf %174 : vector<1x128xf32> to vector<1x128xbf16>
    %cst_34 = arith.constant dense<0.000000e+00> : vector<1x384xf32>
    %180 = tpu.matmul %179, %0, %cst_34 {dimension_numbers = #tpu.dot_dimension_numbers<[1], [0], [0], [1], [0, 0, 1, 1], [], []>} : vector<1x128xbf16>, vector<128x384xbf16>, vector<1x384xf32> -> vector<1x384xf32>
    %181 = arith.addf %180, %2 : vector<1x384xf32>
    %182 = vector.extract_strided_slice %178 {offsets = [0, 0], sizes = [1, 128], strides = [1, 1]} : vector<1x384xf32> to vector<1x128xf32>
    %183 = vector.extract_strided_slice %181 {offsets = [0, 0], sizes = [1, 128], strides = [1, 1]} : vector<1x384xf32> to vector<1x128xf32>
    %184 = arith.addf %182, %183 : vector<1x128xf32>
    %185 = arith.negf %184 : vector<1x128xf32>
    %186 = math.exp %185 : vector<1x128xf32>
    %cst_35 = arith.constant 1.000000e+00 : f32
    %187 = vector.broadcast %cst_35 : f32 to vector<1x128xf32>
    %188 = arith.addf %187, %186 : vector<1x128xf32>
    %189 = arith.divf %187, %188 : vector<1x128xf32>
    %190 = vector.extract_strided_slice %178 {offsets = [0, 128], sizes = [1, 128], strides = [1, 1]} : vector<1x384xf32> to vector<1x128xf32>
    %191 = vector.extract_strided_slice %181 {offsets = [0, 128], sizes = [1, 128], strides = [1, 1]} : vector<1x384xf32> to vector<1x128xf32>
    %192 = arith.addf %190, %191 : vector<1x128xf32>
    %193 = arith.negf %192 : vector<1x128xf32>
    %194 = math.exp %193 : vector<1x128xf32>
    %cst_36 = arith.constant 1.000000e+00 : f32
    %195 = vector.broadcast %cst_36 : f32 to vector<1x128xf32>
    %196 = arith.addf %195, %194 : vector<1x128xf32>
    %197 = arith.divf %195, %196 : vector<1x128xf32>
    %198 = vector.extract_strided_slice %178 {offsets = [0, 256], sizes = [1, 128], strides = [1, 1]} : vector<1x384xf32> to vector<1x128xf32>
    %199 = vector.extract_strided_slice %181 {offsets = [0, 256], sizes = [1, 128], strides = [1, 1]} : vector<1x384xf32> to vector<1x128xf32>
    %200 = arith.mulf %189, %199 : vector<1x128xf32>
    %201 = arith.addf %198, %200 : vector<1x128xf32>
    %202 = math.tanh %201 : vector<1x128xf32>
    %cst_37 = arith.constant 1.000000e+00 : f32
    %203 = vector.broadcast %cst_37 : f32 to vector<1x128xf32>
    %204 = arith.subf %203, %197 : vector<1x128xf32>
    %205 = arith.mulf %204, %202 : vector<1x128xf32>
    %206 = arith.mulf %197, %174 : vector<1x128xf32>
    %207 = arith.addf %205, %206 : vector<1x128xf32>
    %208 = vector.extract_strided_slice %3 {offsets = [5, 0], sizes = [1, 128], strides = [1, 1]} : vector<8x128xf32> to vector<1x128xf32>
    %209 = arith.mulf %208, %207 : vector<1x128xf32>
    %210 = arith.addf %177, %209 : vector<1x128xf32>
    %211 = vector.extract_strided_slice %10 {offsets = [6, 0], sizes = [1, 384], strides = [1, 1]} : vector<8x384xf32> to vector<1x384xf32>
    %212 = arith.truncf %207 : vector<1x128xf32> to vector<1x128xbf16>
    %cst_38 = arith.constant dense<0.000000e+00> : vector<1x384xf32>
    %213 = tpu.matmul %212, %0, %cst_38 {dimension_numbers = #tpu.dot_dimension_numbers<[1], [0], [0], [1], [0, 0, 1, 1], [], []>} : vector<1x128xbf16>, vector<128x384xbf16>, vector<1x384xf32> -> vector<1x384xf32>
    %214 = arith.addf %213, %2 : vector<1x384xf32>
    %215 = vector.extract_strided_slice %211 {offsets = [0, 0], sizes = [1, 128], strides = [1, 1]} : vector<1x384xf32> to vector<1x128xf32>
    %216 = vector.extract_strided_slice %214 {offsets = [0, 0], sizes = [1, 128], strides = [1, 1]} : vector<1x384xf32> to vector<1x128xf32>
    %217 = arith.addf %215, %216 : vector<1x128xf32>
    %218 = arith.negf %217 : vector<1x128xf32>
    %219 = math.exp %218 : vector<1x128xf32>
    %cst_39 = arith.constant 1.000000e+00 : f32
    %220 = vector.broadcast %cst_39 : f32 to vector<1x128xf32>
    %221 = arith.addf %220, %219 : vector<1x128xf32>
    %222 = arith.divf %220, %221 : vector<1x128xf32>
    %223 = vector.extract_strided_slice %211 {offsets = [0, 128], sizes = [1, 128], strides = [1, 1]} : vector<1x384xf32> to vector<1x128xf32>
    %224 = vector.extract_strided_slice %214 {offsets = [0, 128], sizes = [1, 128], strides = [1, 1]} : vector<1x384xf32> to vector<1x128xf32>
    %225 = arith.addf %223, %224 : vector<1x128xf32>
    %226 = arith.negf %225 : vector<1x128xf32>
    %227 = math.exp %226 : vector<1x128xf32>
    %cst_40 = arith.constant 1.000000e+00 : f32
    %228 = vector.broadcast %cst_40 : f32 to vector<1x128xf32>
    %229 = arith.addf %228, %227 : vector<1x128xf32>
    %230 = arith.divf %228, %229 : vector<1x128xf32>
    %231 = vector.extract_strided_slice %211 {offsets = [0, 256], sizes = [1, 128], strides = [1, 1]} : vector<1x384xf32> to vector<1x128xf32>
    %232 = vector.extract_strided_slice %214 {offsets = [0, 256], sizes = [1, 128], strides = [1, 1]} : vector<1x384xf32> to vector<1x128xf32>
    %233 = arith.mulf %222, %232 : vector<1x128xf32>
    %234 = arith.addf %231, %233 : vector<1x128xf32>
    %235 = math.tanh %234 : vector<1x128xf32>
    %cst_41 = arith.constant 1.000000e+00 : f32
    %236 = vector.broadcast %cst_41 : f32 to vector<1x128xf32>
    %237 = arith.subf %236, %230 : vector<1x128xf32>
    %238 = arith.mulf %237, %235 : vector<1x128xf32>
    %239 = arith.mulf %230, %207 : vector<1x128xf32>
    %240 = arith.addf %238, %239 : vector<1x128xf32>
    %241 = vector.extract_strided_slice %3 {offsets = [6, 0], sizes = [1, 128], strides = [1, 1]} : vector<8x128xf32> to vector<1x128xf32>
    %242 = arith.mulf %241, %240 : vector<1x128xf32>
    %243 = arith.addf %210, %242 : vector<1x128xf32>
    %244 = vector.extract_strided_slice %10 {offsets = [7, 0], sizes = [1, 384], strides = [1, 1]} : vector<8x384xf32> to vector<1x384xf32>
    %245 = arith.truncf %240 : vector<1x128xf32> to vector<1x128xbf16>
    %cst_42 = arith.constant dense<0.000000e+00> : vector<1x384xf32>
    %246 = tpu.matmul %245, %0, %cst_42 {dimension_numbers = #tpu.dot_dimension_numbers<[1], [0], [0], [1], [0, 0, 1, 1], [], []>} : vector<1x128xbf16>, vector<128x384xbf16>, vector<1x384xf32> -> vector<1x384xf32>
    %247 = arith.addf %246, %2 : vector<1x384xf32>
    %248 = vector.extract_strided_slice %244 {offsets = [0, 0], sizes = [1, 128], strides = [1, 1]} : vector<1x384xf32> to vector<1x128xf32>
    %249 = vector.extract_strided_slice %247 {offsets = [0, 0], sizes = [1, 128], strides = [1, 1]} : vector<1x384xf32> to vector<1x128xf32>
    %250 = arith.addf %248, %249 : vector<1x128xf32>
    %251 = arith.negf %250 : vector<1x128xf32>
    %252 = math.exp %251 : vector<1x128xf32>
    %cst_43 = arith.constant 1.000000e+00 : f32
    %253 = vector.broadcast %cst_43 : f32 to vector<1x128xf32>
    %254 = arith.addf %253, %252 : vector<1x128xf32>
    %255 = arith.divf %253, %254 : vector<1x128xf32>
    %256 = vector.extract_strided_slice %244 {offsets = [0, 128], sizes = [1, 128], strides = [1, 1]} : vector<1x384xf32> to vector<1x128xf32>
    %257 = vector.extract_strided_slice %247 {offsets = [0, 128], sizes = [1, 128], strides = [1, 1]} : vector<1x384xf32> to vector<1x128xf32>
    %258 = arith.addf %256, %257 : vector<1x128xf32>
    %259 = arith.negf %258 : vector<1x128xf32>
    %260 = math.exp %259 : vector<1x128xf32>
    %cst_44 = arith.constant 1.000000e+00 : f32
    %261 = vector.broadcast %cst_44 : f32 to vector<1x128xf32>
    %262 = arith.addf %261, %260 : vector<1x128xf32>
    %263 = arith.divf %261, %262 : vector<1x128xf32>
    %264 = vector.extract_strided_slice %244 {offsets = [0, 256], sizes = [1, 128], strides = [1, 1]} : vector<1x384xf32> to vector<1x128xf32>
    %265 = vector.extract_strided_slice %247 {offsets = [0, 256], sizes = [1, 128], strides = [1, 1]} : vector<1x384xf32> to vector<1x128xf32>
    %266 = arith.mulf %255, %265 : vector<1x128xf32>
    %267 = arith.addf %264, %266 : vector<1x128xf32>
    %268 = math.tanh %267 : vector<1x128xf32>
    %cst_45 = arith.constant 1.000000e+00 : f32
    %269 = vector.broadcast %cst_45 : f32 to vector<1x128xf32>
    %270 = arith.subf %269, %263 : vector<1x128xf32>
    %271 = arith.mulf %270, %268 : vector<1x128xf32>
    %272 = arith.mulf %263, %240 : vector<1x128xf32>
    %273 = arith.addf %271, %272 : vector<1x128xf32>
    %274 = vector.extract_strided_slice %3 {offsets = [7, 0], sizes = [1, 128], strides = [1, 1]} : vector<8x128xf32> to vector<1x128xf32>
    %275 = arith.mulf %274, %273 : vector<1x128xf32>
    %276 = arith.addf %243, %275 : vector<1x128xf32>
    %c0_46 = arith.constant 0 : index
    %c0_47 = arith.constant 0 : index
    %277 = vector.load %arg5[%c0_46, %c0_47] : memref<1x128xf32, #tpu.memory_space<vmem>>, vector<1x128xf32>
    %278 = arith.mulf %276, %277 : vector<1x128xf32>
    %cst_48 = arith.constant dense<0.000000e+00> : vector<1xf32>
    %279 = vector.multi_reduction <add>, %278, %cst_48 [1] : vector<1x128xf32> to vector<1xf32>
    %280 = vector.shape_cast %279 : vector<1xf32> to vector<1x1xf32>
    %281 = vector.extract_strided_slice %4 {offsets = [0, 0], sizes = [1, 1], strides = [1, 1]} : vector<1x2xf32> to vector<1x1xf32>
    %282 = arith.addf %280, %281 : vector<1x1xf32>
    %283 = arith.negf %282 : vector<1x1xf32>
    %284 = math.exp %283 : vector<1x1xf32>
    %cst_49 = arith.constant 1.000000e+00 : f32
    %285 = vector.broadcast %cst_49 : f32 to vector<1x1xf32>
    %286 = arith.addf %285, %284 : vector<1x1xf32>
    %287 = arith.divf %285, %286 : vector<1x1xf32>
    %288 = vector.extract_strided_slice %4 {offsets = [0, 1], sizes = [1, 1], strides = [1, 1]} : vector<1x2xf32> to vector<1x1xf32>
    %289 = arith.subf %288, %287 : vector<1x1xf32>
    %290 = arith.mulf %289, %289 : vector<1x1xf32>
    %c0_50 = arith.constant 0 : index
    %c0_51 = arith.constant 0 : index
    %291 = vector.load %arg7[%c0_50, %c0_51] : memref<1x2xf32, #tpu.memory_space<vmem>>, vector<1x1xf32>
    tpu.vector_store %arg7[%c0_50, %c0_51], %287 {strides = array<i32>} : memref<1x2xf32, #tpu.memory_space<vmem>>, vector<1x1xf32>,
    %c0_52 = arith.constant 0 : index
    %c1_53 = arith.constant 1 : index
    %292 = vector.load %arg7[%c0_52, %c1_53] : memref<1x2xf32, #tpu.memory_space<vmem>>, vector<1x1xf32>
    tpu.vector_store %arg7[%c0_52, %c1_53], %290 {strides = array<i32>} : memref<1x2xf32, #tpu.memory_space<vmem>>, vector<1x1xf32>,
    return
  }
}

</mosaic_0001>

<llo_original>
// kernel: model_forward.1
$region0: #{model_forward.1}
  #allocation0 [shape = 'u32[]', space=smem, size = 0x4, offset = 0x4, fixed_abs, tag = 'smem constant byte address 0x4 - core index']
  #allocation1 [shape = 'u32[144,128]{1,0:T(1,128)}', space=vmem, size = 0x12000, scoped, tag = 'internal scratch']
  %s0 = inlined_call_operand.vmem [shape: f32[8,832], index: 0, kind: input, shape index: {}]
  %s1 = inlined_call_operand.vmem [shape: f32[8,128], index: 1, kind: input, shape index: {}]
  %s2 = inlined_call_operand.hbm [shape: bf16[832,384], index: 2, kind: input, shape index: {}]
  %s3 = inlined_call_operand.hbm [shape: bf16[128,384], index: 3, kind: input, shape index: {}]
  %s4 = inlined_call_operand.vmem [shape: f32[2,384], index: 4, kind: input, shape index: {}]
  %s5 = inlined_call_operand.vmem [shape: f32[1,128], index: 5, kind: input, shape index: {}]
  %s6 = inlined_call_operand.vmem [shape: f32[1,2], index: 6, kind: input, shape index: {}]
  %s7 = inlined_call_operand.vmem [shape: f32[1,2], index: 7, kind: output, shape index: {}]
  %s8 = sld [smem:[#allocation0]]
  $region46: #{model_forward.1} parent=0
    _
  %s10 = ssub.s32 1, %s8
  %s11 = scalar_select 0, %s10, %s8
  $region1: #{model_forward.1} parent=0
    #allocation2 [shape = 'u8[638976]{0}', space=vmem, size = 0x9c000, scoped, tag = 'input window, operand 2, single buffered']
    #allocation3 [shape = 's32[1]{0}', space=sflag, size = 0x4, scoped, tag = 'scoped memory for model_forward.1']
    #allocation4 [shape = 'u8[98304]{0}', space=vmem, size = 0x18000, scoped, tag = 'input window, operand 3, single buffered']
    #allocation5 [shape = 's32[1]{0}', space=sflag, size = 0x4, scoped, tag = 'scoped memory for model_forward.1']
    %12 = vsyncpa [#allocation3], 0
    %13 = vsyncpa [#allocation5], 0
    // Predicated region
    $region2: #{model_forward.1} parent=1 // pred_check
      _
    $region3: #{model_forward.1} parent=1 // pred_check_branch
      %15 = sbr.rel (0) target = $region5
    $region4: #{model_forward.1} parent=1 // pred_region
      _
    $region5: #{model_forward.1} parent=1 // pred_fallthru
      _
    // Predicated region
    $region6: #{model_forward.1} parent=1 // pred_check
      _
    $region7: #{model_forward.1} parent=1 // pred_check_branch
      %17 = sbr.rel (0) target = $region9
    $region8: #{model_forward.1} parent=1 // pred_region
      _
    $region9: #{model_forward.1} parent=1 // pred_fallthru
      _
    // Predicated region
    $region10: #{model_forward.1} parent=1 // pred_check
      _
    $region11: #{model_forward.1} parent=1 // pred_check_branch
      %19 = sbr.rel (0) target = $region13
    $region12: #{model_forward.1} parent=1 // pred_region
      %s21 = ssub.s32 19968, 19968
      %22 = vsyncadd [#allocation3], %s21
      %s23 = sshll.u32 [#allocation2], 4
      %s24 = int_to_ptr.vmem [resolvable:$true] %s23
      %29 = dma.hbm_to_vmem [thread:$0]  %s2, 19968, %s24, [#allocation3], 192, 192, 12
    $region13: #{model_forward.1} parent=1 // pred_fallthru
      _
    // Predicated region
    $region14: #{model_forward.1} parent=1 // pred_check
      _
    $region15: #{model_forward.1} parent=1 // pred_check_branch
      %31 = sbr.rel (0) target = $region17
    $region16: #{model_forward.1} parent=1 // pred_region
      %s33 = ssub.s32 3072, 3072
      %34 = vsyncadd [#allocation5], %s33
      %s35 = sshll.u32 [#allocation4], 4
      %s36 = int_to_ptr.vmem [resolvable:$true] %s35
      %41 = dma.hbm_to_vmem [thread:$0]  %s3, 3072, %s36, [#allocation5], 192, 192, 12
    $region17: #{model_forward.1} parent=1 // pred_fallthru
      _
    // Predicated region
    $region18: #{model_forward.1} parent=1 // pred_check
      _
    $region19: #{model_forward.1} parent=1 // pred_check_branch
      %43 = sbr.rel (0) target = $region21
    $region20: #{model_forward.1} parent=1 // pred_region
      _
    $region21: #{model_forward.1} parent=1 // pred_fallthru
      _
    // Predicated region
    $region22: #{model_forward.1} parent=1 // pred_check
      _
    $region23: #{model_forward.1} parent=1 // pred_check_branch
      %45 = sbr.rel (0) target = $region25
    $region24: #{model_forward.1} parent=1 // pred_region
      _
    $region25: #{model_forward.1} parent=1 // pred_fallthru
      _
    // Predicated region
    $region26: #{model_forward.1} parent=1 // pred_check
      _
    $region27: #{model_forward.1} parent=1 // pred_check_branch
      %47 = sbr.rel (0) target = $region29
    $region28: #{model_forward.1} parent=1 // pred_region
      _
    $region29: #{model_forward.1} parent=1 // pred_fallthru
      _
    // Predicated region
    $region30: #{model_forward.1} parent=1 // pred_check
      _
    $region31: #{model_forward.1} parent=1 // pred_check_branch
      %49 = sbr.rel (0) target = $region33
    $region32: #{model_forward.1} parent=1 // pred_region
      %50 = dma.done [#allocation3], 19968
    $region33: #{model_forward.1} parent=1 // pred_fallthru
      _
    // Predicated region
    $region34: #{model_forward.1} parent=1 // pred_check
      _
    $region35: #{model_forward.1} parent=1 // pred_check_branch
      %52 = sbr.rel (0) target = $region37
    $region36: #{model_forward.1} parent=1 // pred_region
      %53 = dma.done [#allocation5], 3072
    $region37: #{model_forward.1} parent=1 // pred_fallthru
      _
    %v55 = vld [vmem:[#allocation4] sm:$0xff]
    %v56 = vld [vmem:[#allocation4 + $0x8] sm:$0xf]
    %v57 = vld [vmem:[#allocation4 + $0xc] sm:$0xff]
    %v58 = vld [vmem:[#allocation4 + $0x14] sm:$0xf]
    %v59 = vld [vmem:[#allocation4 + $0x18] sm:$0xff]
    %v60 = vld [vmem:[#allocation4 + $0x20] sm:$0xf]
    %v61 = vld [vmem:[#allocation4 + $0x24] sm:$0xff]
    %v62 = vld [vmem:[#allocation4 + $0x2c] sm:$0xf]
    %v63 = vld [vmem:[#allocation4 + $0x30] sm:$0xff]
    %v64 = vld [vmem:[#allocation4 + $0x38] sm:$0xf]
    %v65 = vld [vmem:[#allocation4 + $0x3c] sm:$0xff]
    %v66 = vld [vmem:[#allocation4 + $0x44] sm:$0xf]
    %v67 = vld [vmem:[#allocation4 + $0x48] sm:$0xff]
    %v68 = vld [vmem:[#allocation4 + $0x50] sm:$0xf]
    %v69 = vld [vmem:[#allocation4 + $0x54] sm:$0xff]
    %v70 = vld [vmem:[#allocation4 + $0x5c] sm:$0xf]
    %v71 = vld [vmem:[#allocation4 + $0x60] sm:$0xff]
    %v72 = vld [vmem:[#allocation4 + $0x68] sm:$0xf]
    %v73 = vld [vmem:[#allocation4 + $0x6c] sm:$0xff]
    %v74 = vld [vmem:[#allocation4 + $0x74] sm:$0xf]
    %v75 = vld [vmem:[#allocation4 + $0x78] sm:$0xff]
    %v76 = vld [vmem:[#allocation4 + $0x80] sm:$0xf]
    %v77 = vld [vmem:[#allocation4 + $0x84] sm:$0xff]
    %v78 = vld [vmem:[#allocation4 + $0x8c] sm:$0xf]
    %v79 = vld [vmem:[#allocation4 + $0x90] sm:$0xff]
    %v80 = vld [vmem:[#allocation4 + $0x98] sm:$0xf]
    %v81 = vld [vmem:[#allocation4 + $0x9c] sm:$0xff]
    %v82 = vld [vmem:[#allocation4 + $0xa4] sm:$0xf]
    %v83 = vld [vmem:[#allocation4 + $0xa8] sm:$0xff]
    %v84 = vld [vmem:[#allocation4 + $0xb0] sm:$0xf]
    %v85 = vld [vmem:[#allocation4 + $0xb4] sm:$0xff]
    %v86 = vld [vmem:[#allocation4 + $0xbc] sm:$0xf]
    %v87 = vld [vmem:[%s4] ss:$2 sm:$0x7]
    %s88 = scalar_lea.vmem %s4, 1
    %v89 = vld [vmem:[%s88] ss:$2 sm:$0x7]
    %v90 = vld [vmem:[%s1] sm:$0xff]
    %v91 = vld [vmem:[%s6] sm:$0x1]
    %v92 = vld [vmem:[%s0] sm:$0xff]
    %v93 = vld [vmem:[%s0 + $0x8] sm:$0xff]
    %v94 = vld [vmem:[%s0 + $0x10] sm:$0xff]
    %v95 = vld [vmem:[%s0 + $0x18] sm:$0xff]
    %v96 = vld [vmem:[%s0 + $0x20] sm:$0xff]
    %v97 = vld [vmem:[%s0 + $0x28] sm:$0xff]
    %v98 = vld [vmem:[%s0 + $0x30] sm:$0xff]
    %v99 = vpack.c.bf16 %v92, %v92
    %v100 = vpack.c.bf16 %v93, %v93
    %v101 = vpack.c.bf16 %v94, %v94
    %v102 = vpack.c.bf16 %v95, %v95
    %v103 = vpack.c.bf16 %v96, %v96
    %v104 = vpack.c.bf16 %v97, %v97
    %v105 = vpack.c.bf16 %v98, %v98
    %v106 = vld [vmem:[#allocation2] sm:$0xff]
    %v107 = vld [vmem:[#allocation2 + $0x8] sm:$0xf]
    %v108 = vld [vmem:[#allocation2 + $0xc] sm:$0xff]
    %v109 = vld [vmem:[#allocation2 + $0x14] sm:$0xf]
    %v110 = vld [vmem:[#allocation2 + $0x18] sm:$0xff]
    %v111 = vld [vmem:[#allocation2 + $0x20] sm:$0xf]
    %v112 = vld [vmem:[#allocation2 + $0x24] sm:$0xff]
    %v113 = vld [vmem:[#allocation2 + $0x2c] sm:$0xf]
    %v114 = vld [vmem:[#allocation2 + $0x30] sm:$0xff]
    %v115 = vld [vmem:[#allocation2 + $0x38] sm:$0xf]
    %v116 = vld [vmem:[#allocation2 + $0x3c] sm:$0xff]
    %v117 = vld [vmem:[#allocation2 + $0x44] sm:$0xf]
    %v118 = vld [vmem:[#allocation2 + $0x48] sm:$0xff]
    %v119 = vld [vmem:[#allocation2 + $0x50] sm:$0xf]
    %v120 = vld [vmem:[#allocation2 + $0x54] sm:$0xff]
    %v121 = vld [vmem:[#allocation2 + $0x5c] sm:$0xf]
    %v122 = vld [vmem:[#allocation2 + $0x60] sm:$0xff]
    %v123 = vld [vmem:[#allocation2 + $0x68] sm:$0xf]
    %v124 = vld [vmem:[#allocation2 + $0x6c] sm:$0xff]
    %v125 = vld [vmem:[#allocation2 + $0x74] sm:$0xf]
    %v126 = vld [vmem:[#allocation2 + $0x78] sm:$0xff]
    %v127 = vld [vmem:[#allocation2 + $0x80] sm:$0xf]
    %v128 = vld [vmem:[#allocation2 + $0x84] sm:$0xff]
    %v129 = vld [vmem:[#allocation2 + $0x8c] sm:$0xf]
    %v130 = vld [vmem:[#allocation2 + $0x90] sm:$0xff]
    %v131 = vld [vmem:[#allocation2 + $0x98] sm:$0xf]
    %v132 = vld [vmem:[#allocation2 + $0x9c] sm:$0xff]
    %v133 = vld [vmem:[#allocation2 + $0xa4] sm:$0xf]
    %v134 = vld [vmem:[#allocation2 + $0xa8] sm:$0xff]
    %v135 = vld [vmem:[#allocation2 + $0xb0] sm:$0xf]
    %v136 = vld [vmem:[#allocation2 + $0xb4] sm:$0xff]
    %v137 = vld [vmem:[#allocation2 + $0xbc] sm:$0xf]
    %v138 = vld [vmem:[#allocation2 + $0xc0] sm:$0xff]
    %v139 = vld [vmem:[#allocation2 + $0xc8] sm:$0xf]
    %v140 = vld [vmem:[#allocation2 + $0xcc] sm:$0xff]
    %v141 = vld [vmem:[#allocation2 + $0xd4] sm:$0xf]
    %v142 = vld [vmem:[#allocation2 + $0xd8] sm:$0xff]
    %v143 = vld [vmem:[#allocation2 + $0xe0] sm:$0xf]
    %v144 = vld [vmem:[#allocation2 + $0xe4] sm:$0xff]
    %v145 = vld [vmem:[#allocation2 + $0xec] sm:$0xf]
    %v146 = vld [vmem:[#allocation2 + $0xf0] sm:$0xff]
    %v147 = vld [vmem:[#allocation2 + $0xf8] sm:$0xf]
    %v148 = vld [vmem:[#allocation2 + $0xfc] sm:$0xff]
    %v149 = vld [vmem:[#allocation2 + $0x104] sm:$0xf]
    %v150 = vld [vmem:[#allocation2 + $0x108] sm:$0xff]
    %v151 = vld [vmem:[#allocation2 + $0x110] sm:$0xf]
    %v152 = vld [vmem:[#allocation2 + $0x114] sm:$0xff]
    %v153 = vld [vmem:[#allocation2 + $0x11c] sm:$0xf]
    %v154 = vld [vmem:[#allocation2 + $0x120] sm:$0xff]
    %v155 = vld [vmem:[#allocation2 + $0x128] sm:$0xf]
    %v156 = vld [vmem:[#allocation2 + $0x12c] sm:$0xff]
    %v157 = vld [vmem:[#allocation2 + $0x134] sm:$0xf]
    %v158 = vld [vmem:[#allocation2 + $0x138] sm:$0xff]
    %v159 = vld [vmem:[#allocation2 + $0x140] sm:$0xf]
    %v160 = vld [vmem:[#allocation2 + $0x144] sm:$0xff]
    %v161 = vld [vmem:[#allocation2 + $0x14c] sm:$0xf]
    %v162 = vld [vmem:[#allocation2 + $0x150] sm:$0xff]
    %v163 = vld [vmem:[#allocation2 + $0x158] sm:$0xf]
    %v164 = vld [vmem:[#allocation2 + $0x15c] sm:$0xff]
    %v165 = vld [vmem:[#allocation2 + $0x164] sm:$0xf]
    %v166 = vld [vmem:[#allocation2 + $0x168] sm:$0xff]
    %v167 = vld [vmem:[#allocation2 + $0x170] sm:$0xf]
    %v168 = vld [vmem:[#allocation2 + $0x174] sm:$0xff]
    %v169 = vld [vmem:[#allocation2 + $0x17c] sm:$0xf]
    %v170 = vld [vmem:[#allocation2 + $0x180] sm:$0xff]
    %v171 = vld [vmem:[#allocation2 + $0x188] sm:$0xf]
    %v172 = vld [vmem:[#allocation2 + $0x18c] sm:$0xff]
    %v173 = vld [vmem:[#allocation2 + $0x194] sm:$0xf]
    %v174 = vld [vmem:[#allocation2 + $0x198] sm:$0xff]
    %v175 = vld [vmem:[#allocation2 + $0x1a0] sm:$0xf]
    %v176 = vld [vmem:[#allocation2 + $0x1a4] sm:$0xff]
    %v177 = vld [vmem:[#allocation2 + $0x1ac] sm:$0xf]
    %v178 = vld [vmem:[#allocation2 + $0x1b0] sm:$0xff]
    %v179 = vld [vmem:[#allocation2 + $0x1b8] sm:$0xf]
    %v180 = vld [vmem:[#allocation2 + $0x1bc] sm:$0xff]
    %v181 = vld [vmem:[#allocation2 + $0x1c4] sm:$0xf]
    %v182 = vld [vmem:[#allocation2 + $0x1c8] sm:$0xff]
    %v183 = vld [vmem:[#allocation2 + $0x1d0] sm:$0xf]
    %v184 = vld [vmem:[#allocation2 + $0x1d4] sm:$0xff]
    %v185 = vld [vmem:[#allocation2 + $0x1dc] sm:$0xf]
    %v186 = vld [vmem:[#allocation2 + $0x1e0] sm:$0xff]
    %v187 = vld [vmem:[#allocation2 + $0x1e8] sm:$0xf]
    %v188 = vld [vmem:[#allocation2 + $0x1ec] sm:$0xff]
    %v189 = vld [vmem:[#allocation2 + $0x1f4] sm:$0xf]
    %v190 = vld [vmem:[#allocation2 + $0x1f8] sm:$0xff]
    %v191 = vld [vmem:[#allocation2 + $0x200] sm:$0xf]
    %v192 = vld [vmem:[#allocation2 + $0x204] sm:$0xff]
    %v193 = vld [vmem:[#allocation2 + $0x20c] sm:$0xf]
    %v194 = vld [vmem:[#allocation2 + $0x210] sm:$0xff]
    %v195 = vld [vmem:[#allocation2 + $0x218] sm:$0xf]
    %v196 = vld [vmem:[#allocation2 + $0x21c] sm:$0xff]
    %v197 = vld [vmem:[#allocation2 + $0x224] sm:$0xf]
    %v198 = vld [vmem:[#allocation2 + $0x228] sm:$0xff]
    %v199 = vld [vmem:[#allocation2 + $0x230] sm:$0xf]
    %v200 = vld [vmem:[#allocation2 + $0x234] sm:$0xff]
    %v201 = vld [vmem:[#allocation2 + $0x23c] sm:$0xf]
    %v202 = vld [vmem:[#allocation2 + $0x240] sm:$0xff]
    %v203 = vld [vmem:[#allocation2 + $0x248] sm:$0xf]
    %v204 = vld [vmem:[#allocation2 + $0x24c] sm:$0xff]
    %v205 = vld [vmem:[#allocation2 + $0x254] sm:$0xf]
    %v206 = vld [vmem:[#allocation2 + $0x258] sm:$0xff]
    %v207 = vld [vmem:[#allocation2 + $0x260] sm:$0xf]
    %v208 = vld [vmem:[#allocation2 + $0x264] sm:$0xff]
    %v209 = vld [vmem:[#allocation2 + $0x26c] sm:$0xf]
    %v210 = vld [vmem:[#allocation2 + $0x270] sm:$0xff]
    %v211 = vld [vmem:[#allocation2 + $0x278] sm:$0xf]
    %v212 = vld [vmem:[#allocation2 + $0x27c] sm:$0xff]
    %v213 = vld [vmem:[#allocation2 + $0x284] sm:$0xf]
    %v214 = vld [vmem:[#allocation2 + $0x288] sm:$0xff]
    %v215 = vld [vmem:[#allocation2 + $0x290] sm:$0xf]
    %v216 = vld [vmem:[#allocation2 + $0x294] sm:$0xff]
    %v217 = vld [vmem:[#allocation2 + $0x29c] sm:$0xf]
    %v218 = vld [vmem:[#allocation2 + $0x2a0] sm:$0xff]
    %v219 = vld [vmem:[#allocation2 + $0x2a8] sm:$0xf]
    %v220 = vld [vmem:[#allocation2 + $0x2ac] sm:$0xff]
    %v221 = vld [vmem:[#allocation2 + $0x2b4] sm:$0xf]
    %v222 = vld [vmem:[#allocation2 + $0x2b8] sm:$0xff]
    %v223 = vld [vmem:[#allocation2 + $0x2c0] sm:$0xf]
    %v224 = vld [vmem:[#allocation2 + $0x2c4] sm:$0xff]
    %v225 = vld [vmem:[#allocation2 + $0x2cc] sm:$0xf]
    %v226 = vld [vmem:[#allocation2 + $0x2d0] sm:$0xff]
    %v227 = vld [vmem:[#allocation2 + $0x2d8] sm:$0xf]
    %v228 = vld [vmem:[#allocation2 + $0x2dc] sm:$0xff]
    %v229 = vld [vmem:[#allocation2 + $0x2e4] sm:$0xf]
    %v230 = vld [vmem:[#allocation2 + $0x2e8] sm:$0xff]
    %v231 = vld [vmem:[#allocation2 + $0x2f0] sm:$0xf]
    %v232 = vld [vmem:[#allocation2 + $0x2f4] sm:$0xff]
    %v233 = vld [vmem:[#allocation2 + $0x2fc] sm:$0xf]
    %v234 = vld [vmem:[#allocation2 + $0x300] sm:$0xff]
    %v235 = vld [vmem:[#allocation2 + $0x308] sm:$0xf]
    %v236 = vld [vmem:[#allocation2 + $0x30c] sm:$0xff]
    %v237 = vld [vmem:[#allocation2 + $0x314] sm:$0xf]
    %v238 = vld [vmem:[#allocation2 + $0x318] sm:$0xff]
    %v239 = vld [vmem:[#allocation2 + $0x320] sm:$0xf]
    %v240 = vld [vmem:[#allocation2 + $0x324] sm:$0xff]
    %v241 = vld [vmem:[#allocation2 + $0x32c] sm:$0xf]
    %v242 = vld [vmem:[#allocation2 + $0x330] sm:$0xff]
    %v243 = vld [vmem:[#allocation2 + $0x338] sm:$0xf]
    %v244 = vld [vmem:[#allocation2 + $0x33c] sm:$0xff]
    %v245 = vld [vmem:[#allocation2 + $0x344] sm:$0xf]
    %v246 = vld [vmem:[#allocation2 + $0x348] sm:$0xff]
    %v247 = vld [vmem:[#allocation2 + $0x350] sm:$0xf]
    %v248 = vld [vmem:[#allocation2 + $0x354] sm:$0xff]
    %v249 = vld [vmem:[#allocation2 + $0x35c] sm:$0xf]
    %v250 = vld [vmem:[#allocation2 + $0x360] sm:$0xff]
    %v251 = vld [vmem:[#allocation2 + $0x368] sm:$0xf]
    %v252 = vld [vmem:[#allocation2 + $0x36c] sm:$0xff]
    %v253 = vld [vmem:[#allocation2 + $0x374] sm:$0xf]
    %v254 = vld [vmem:[#allocation2 + $0x378] sm:$0xff]
    %v255 = vld [vmem:[#allocation2 + $0x380] sm:$0xf]
    %v256 = vld [vmem:[#allocation2 + $0x384] sm:$0xff]
    %v257 = vld [vmem:[#allocation2 + $0x38c] sm:$0xf]
    %v258 = vld [vmem:[#allocation2 + $0x390] sm:$0xff]
    %v259 = vld [vmem:[#allocation2 + $0x398] sm:$0xf]
    %v260 = vld [vmem:[#allocation2 + $0x39c] sm:$0xff]
    %v261 = vld [vmem:[#allocation2 + $0x3a4] sm:$0xf]
    %v262 = vld [vmem:[#allocation2 + $0x3a8] sm:$0xff]
    %v263 = vld [vmem:[#allocation2 + $0x3b0] sm:$0xf]
    %v264 = vld [vmem:[#allocation2 + $0x3b4] sm:$0xff]
    %v265 = vld [vmem:[#allocation2 + $0x3bc] sm:$0xf]
    %v266 = vld [vmem:[#allocation2 + $0x3c0] sm:$0xff]
    %v267 = vld [vmem:[#allocation2 + $0x3c8] sm:$0xf]
    %v268 = vld [vmem:[#allocation2 + $0x3cc] sm:$0xff]
    %v269 = vld [vmem:[#allocation2 + $0x3d4] sm:$0xf]
    %v270 = vld [vmem:[#allocation2 + $0x3d8] sm:$0xff]
    %v271 = vld [vmem:[#allocation2 + $0x3e0] sm:$0xf]
    %v272 = vld [vmem:[#allocation2 + $0x3e4] sm:$0xff]
    %v273 = vld [vmem:[#allocation2 + $0x3ec] sm:$0xf]
    %v274 = vld [vmem:[#allocation2 + $0x3f0] sm:$0xff]
    %v275 = vld [vmem:[#allocation2 + $0x3f8] sm:$0xf]
    %v276 = vld [vmem:[#allocation2 + $0x3fc] sm:$0xff]
    %v277 = vld [vmem:[#allocation2 + $0x404] sm:$0xf]
    %v278 = vld [vmem:[#allocation2 + $0x408] sm:$0xff]
    %v279 = vld [vmem:[#allocation2 + $0x410] sm:$0xf]
    %v280 = vld [vmem:[#allocation2 + $0x414] sm:$0xff]
    %v281 = vld [vmem:[#allocation2 + $0x41c] sm:$0xf]
    %v282 = vld [vmem:[#allocation2 + $0x420] sm:$0xff]
    %v283 = vld [vmem:[#allocation2 + $0x428] sm:$0xf]
    %v284 = vld [vmem:[#allocation2 + $0x42c] sm:$0xff]
    %v285 = vld [vmem:[#allocation2 + $0x434] sm:$0xf]
    %v286 = vld [vmem:[#allocation2 + $0x438] sm:$0xff]
    %v287 = vld [vmem:[#allocation2 + $0x440] sm:$0xf]
    %v288 = vld [vmem:[#allocation2 + $0x444] sm:$0xff]
    %v289 = vld [vmem:[#allocation2 + $0x44c] sm:$0xf]
    %v290 = vld [vmem:[#allocation2 + $0x450] sm:$0xff]
    %v291 = vld [vmem:[#allocation2 + $0x458] sm:$0xf]
    %v292 = vld [vmem:[#allocation2 + $0x45c] sm:$0xff]
    %v293 = vld [vmem:[#allocation2 + $0x464] sm:$0xf]
    %v294 = vld [vmem:[#allocation2 + $0x468] sm:$0xff]
    %v295 = vld [vmem:[#allocation2 + $0x470] sm:$0xf]
    %v296 = vld [vmem:[#allocation2 + $0x474] sm:$0xff]
    %v297 = vld [vmem:[#allocation2 + $0x47c] sm:$0xf]
    %v298 = vld [vmem:[#allocation2 + $0x480] sm:$0xff]
    %v299 = vld [vmem:[#allocation2 + $0x488] sm:$0xf]
    %v300 = vld [vmem:[#allocation2 + $0x48c] sm:$0xff]
    %v301 = vld [vmem:[#allocation2 + $0x494] sm:$0xf]
    %v302 = vld [vmem:[#allocation2 + $0x498] sm:$0xff]
    %v303 = vld [vmem:[#allocation2 + $0x4a0] sm:$0xf]
    %v304 = vld [vmem:[#allocation2 + $0x4a4] sm:$0xff]
    %v305 = vld [vmem:[#allocation2 + $0x4ac] sm:$0xf]
    %v306 = vld [vmem:[#allocation2 + $0x4b0] sm:$0xff]
    %v307 = vld [vmem:[#allocation2 + $0x4b8] sm:$0xf]
    %v308 = vld [vmem:[#allocation2 + $0x4bc] sm:$0xff]
    %v309 = vld [vmem:[#allocation2 + $0x4c4] sm:$0xf]
    %v310 = vld [vmem:[#allocation2 + $0x4c8] sm:$0xff]
    %v311 = vld [vmem:[#allocation2 + $0x4d0] sm:$0xf]
    %v312 = vld [vmem:[#allocation2 + $0x4d4] sm:$0xff]
    %v313 = vld [vmem:[#allocation2 + $0x4dc] sm:$0xf]
    %v315 = vlaneseq
    %v316 = vshrl.u32 %v315, 7
    %v317 = vsub.s32 0, %v316
    %v318 = vrot.slane %v87, %v317
    %v319 = vlaneseq
    %v320 = vshrl.u32 %v319, 7
    %v321 = vsub.s32 1, %v320
    %v322 = vrot.slane %v87, %v321
    %v323 = vlaneseq
    %v324 = vshrl.u32 %v323, 7
    %v325 = vsub.s32 2, %v324
    %v326 = vrot.slane %v87, %v325
    %v538 = vunpack.c.l.b16 %v106
    %v539 = vunpack.c.h.b16 %v106
    %v540 = vunpack.c.l.b16 %v107
    %v541 = vunpack.c.l.b16 %v108
    %v542 = vunpack.c.h.b16 %v108
    %v543 = vunpack.c.l.b16 %v109
    %v544 = vunpack.c.l.b16 %v110
    %v545 = vunpack.c.h.b16 %v110
    %v546 = vunpack.c.l.b16 %v111
    %v547 = vunpack.c.l.b16 %v112
    %v548 = vunpack.c.h.b16 %v112
    %v549 = vunpack.c.l.b16 %v113
    %v550 = vunpack.c.l.b16 %v114
    %v551 = vunpack.c.h.b16 %v114
    %v552 = vunpack.c.l.b16 %v115
    %v553 = vunpack.c.l.b16 %v116
    %v554 = vunpack.c.h.b16 %v116
    %v555 = vunpack.c.l.b16 %v117
    %v556 = vunpack.c.l.b16 %v118
    %v557 = vunpack.c.h.b16 %v118
    %v558 = vunpack.c.l.b16 %v119
    %v559 = vunpack.c.l.b16 %v120
    %v560 = vunpack.c.h.b16 %v120
    %v561 = vunpack.c.l.b16 %v121
    %v562 = vunpack.c.l.b16 %v122
    %v563 = vunpack.c.h.b16 %v122
    %v564 = vunpack.c.l.b16 %v123
    %v565 = vunpack.c.l.b16 %v124
    %v566 = vunpack.c.h.b16 %v124
    %v567 = vunpack.c.l.b16 %v125
    %v568 = vunpack.c.l.b16 %v126
    %v569 = vunpack.c.h.b16 %v126
    %v570 = vunpack.c.l.b16 %v127
    %v571 = vunpack.c.l.b16 %v128
    %v572 = vunpack.c.h.b16 %v128
    %v573 = vunpack.c.l.b16 %v129
    %v574 = vunpack.c.l.b16 %v130
    %v575 = vunpack.c.h.b16 %v130
    %v576 = vunpack.c.l.b16 %v131
    %v577 = vunpack.c.l.b16 %v132
    %v578 = vunpack.c.h.b16 %v132
    %v579 = vunpack.c.l.b16 %v133
    %v580 = vunpack.c.l.b16 %v134
    %v581 = vunpack.c.h.b16 %v134
    %v582 = vunpack.c.l.b16 %v135
    %v583 = vunpack.c.l.b16 %v136
    %v584 = vunpack.c.h.b16 %v136
    %v585 = vunpack.c.l.b16 %v137
    %v586 = vunpack.c.l.b16 %v138
    %v587 = vunpack.c.h.b16 %v138
    %v588 = vunpack.c.l.b16 %v139
    %v589 = vunpack.c.l.b16 %v140
    %v590 = vunpack.c.h.b16 %v140
    %v591 = vunpack.c.l.b16 %v141
    %v592 = vunpack.c.l.b16 %v142
    %v593 = vunpack.c.h.b16 %v142
    %v594 = vunpack.c.l.b16 %v143
    %v595 = vunpack.c.l.b16 %v144
    %v596 = vunpack.c.h.b16 %v144
    %v597 = vunpack.c.l.b16 %v145
    %v598 = vunpack.c.l.b16 %v146
    %v599 = vunpack.c.h.b16 %v146
    %v600 = vunpack.c.l.b16 %v147
    %v601 = vunpack.c.l.b16 %v148
    %v602 = vunpack.c.h.b16 %v148
    %v603 = vunpack.c.l.b16 %v149
    %v604 = vunpack.c.l.b16 %v150
    %v605 = vunpack.c.h.b16 %v150
    %v606 = vunpack.c.l.b16 %v151
    %v607 = vunpack.c.l.b16 %v152
    %v608 = vunpack.c.h.b16 %v152
    %v609 = vunpack.c.l.b16 %v153
    %v610 = vunpack.c.l.b16 %v154
    %v611 = vunpack.c.h.b16 %v154
    %v612 = vunpack.c.l.b16 %v155
    %v613 = vunpack.c.l.b16 %v156
    %v614 = vunpack.c.h.b16 %v156
    %v615 = vunpack.c.l.b16 %v157
    %v616 = vunpack.c.l.b16 %v158
    %v617 = vunpack.c.h.b16 %v158
    %v618 = vunpack.c.l.b16 %v159
    %v619 = vunpack.c.l.b16 %v160
    %v620 = vunpack.c.h.b16 %v160
    %v621 = vunpack.c.l.b16 %v161
    %v622 = vunpack.c.l.b16 %v162
    %v623 = vunpack.c.h.b16 %v162
    %v624 = vunpack.c.l.b16 %v163
    %v625 = vunpack.c.l.b16 %v164
    %v626 = vunpack.c.h.b16 %v164
    %v627 = vunpack.c.l.b16 %v165
    %v628 = vunpack.c.l.b16 %v166
    %v629 = vunpack.c.h.b16 %v166
    %v630 = vunpack.c.l.b16 %v167
    %v631 = vunpack.c.l.b16 %v168
    %v632 = vunpack.c.h.b16 %v168
    %v633 = vunpack.c.l.b16 %v169
    %v634 = vunpack.c.l.b16 %v170
    %v635 = vunpack.c.h.b16 %v170
    %v636 = vunpack.c.l.b16 %v171
    %v637 = vunpack.c.l.b16 %v172
    %v638 = vunpack.c.h.b16 %v172
    %v639 = vunpack.c.l.b16 %v173
    %v640 = vunpack.c.l.b16 %v174
    %v641 = vunpack.c.h.b16 %v174
    %v642 = vunpack.c.l.b16 %v175
    %v643 = vunpack.c.l.b16 %v176
    %v644 = vunpack.c.h.b16 %v176
    %v645 = vunpack.c.l.b16 %v177
    %v646 = vunpack.c.l.b16 %v178
    %v647 = vunpack.c.h.b16 %v178
    %v648 = vunpack.c.l.b16 %v179
    %v649 = vunpack.c.l.b16 %v180
    %v650 = vunpack.c.h.b16 %v180
    %v651 = vunpack.c.l.b16 %v181
    %v652 = vunpack.c.l.b16 %v182
    %v653 = vunpack.c.h.b16 %v182
    %v654 = vunpack.c.l.b16 %v183
    %v655 = vunpack.c.l.b16 %v184
    %v656 = vunpack.c.h.b16 %v184
    %v657 = vunpack.c.l.b16 %v185
    %v658 = vunpack.c.l.b16 %v186
    %v659 = vunpack.c.h.b16 %v186
    %v660 = vunpack.c.l.b16 %v187
    %v661 = vunpack.c.l.b16 %v188
    %v662 = vunpack.c.h.b16 %v188
    %v663 = vunpack.c.l.b16 %v189
    %v664 = vunpack.c.l.b16 %v190
    %v665 = vunpack.c.h.b16 %v190
    %v666 = vunpack.c.l.b16 %v191
    %v667 = vunpack.c.l.b16 %v192
    %v668 = vunpack.c.h.b16 %v192
    %v669 = vunpack.c.l.b16 %v193
    %v670 = vunpack.c.l.b16 %v194
    %v671 = vunpack.c.h.b16 %v194
    %v672 = vunpack.c.l.b16 %v195
    %v673 = vunpack.c.l.b16 %v196
    %v674 = vunpack.c.h.b16 %v196
    %v675 = vunpack.c.l.b16 %v197
    %v676 = vunpack.c.l.b16 %v198
    %v677 = vunpack.c.h.b16 %v198
    %v678 = vunpack.c.l.b16 %v199
    %v679 = vunpack.c.l.b16 %v200
    %v680 = vunpack.c.h.b16 %v200
    %v681 = vunpack.c.l.b16 %v201
    %v682 = vunpack.c.l.b16 %v202
    %v683 = vunpack.c.h.b16 %v202
    %v684 = vunpack.c.l.b16 %v203
    %v685 = vunpack.c.l.b16 %v204
    %v686 = vunpack.c.h.b16 %v204
    %v687 = vunpack.c.l.b16 %v205
    %v688 = vunpack.c.l.b16 %v206
    %v689 = vunpack.c.h.b16 %v206
    %v690 = vunpack.c.l.b16 %v207
    %v691 = vunpack.c.l.b16 %v208
    %v692 = vunpack.c.h.b16 %v208
    %v693 = vunpack.c.l.b16 %v209
    %v694 = vunpack.c.l.b16 %v210
    %v695 = vunpack.c.h.b16 %v210
    %v696 = vunpack.c.l.b16 %v211
    %v697 = vunpack.c.l.b16 %v212
    %v698 = vunpack.c.h.b16 %v212
    %v699 = vunpack.c.l.b16 %v213
    %v700 = vunpack.c.l.b16 %v214
    %v701 = vunpack.c.h.b16 %v214
    %v702 = vunpack.c.l.b16 %v215
    %v703 = vunpack.c.l.b16 %v216
    %v704 = vunpack.c.h.b16 %v216
    %v705 = vunpack.c.l.b16 %v217
    %v706 = vunpack.c.l.b16 %v218
    %v707 = vunpack.c.h.b16 %v218
    %v708 = vunpack.c.l.b16 %v219
    %v709 = vunpack.c.l.b16 %v220
    %v710 = vunpack.c.h.b16 %v220
    %v711 = vunpack.c.l.b16 %v221
    %v712 = vunpack.c.l.b16 %v222
    %v713 = vunpack.c.h.b16 %v222
    %v714 = vunpack.c.l.b16 %v223
    %v715 = vunpack.c.l.b16 %v224
    %v716 = vunpack.c.h.b16 %v224
    %v717 = vunpack.c.l.b16 %v225
    %v718 = vunpack.c.l.b16 %v226
    %v719 = vunpack.c.h.b16 %v226
    %v720 = vunpack.c.l.b16 %v227
    %v721 = vunpack.c.l.b16 %v228
    %v722 = vunpack.c.h.b16 %v228
    %v723 = vunpack.c.l.b16 %v229
    %v724 = vunpack.c.l.b16 %v230
    %v725 = vunpack.c.h.b16 %v230
    %v726 = vunpack.c.l.b16 %v231
    %v727 = vunpack.c.l.b16 %v232
    %v728 = vunpack.c.h.b16 %v232
    %v729 = vunpack.c.l.b16 %v233
    %v730 = vunpack.c.l.b16 %v234
    %v731 = vunpack.c.h.b16 %v234
    %v732 = vunpack.c.l.b16 %v235
    %v733 = vunpack.c.l.b16 %v236
    %v734 = vunpack.c.h.b16 %v236
    %v735 = vunpack.c.l.b16 %v237
    %v736 = vunpack.c.l.b16 %v238
    %v737 = vunpack.c.h.b16 %v238
    %v738 = vunpack.c.l.b16 %v239
    %v739 = vunpack.c.l.b16 %v240
    %v740 = vunpack.c.h.b16 %v240
    %v741 = vunpack.c.l.b16 %v241
    %v742 = vunpack.c.l.b16 %v242
    %v743 = vunpack.c.h.b16 %v242
    %v744 = vunpack.c.l.b16 %v243
    %v745 = vunpack.c.l.b16 %v244
    %v746 = vunpack.c.h.b16 %v244
    %v747 = vunpack.c.l.b16 %v245
    %v748 = vunpack.c.l.b16 %v246
    %v749 = vunpack.c.h.b16 %v246
    %v750 = vunpack.c.l.b16 %v247
    %v751 = vunpack.c.l.b16 %v248
    %v752 = vunpack.c.h.b16 %v248
    %v753 = vunpack.c.l.b16 %v249
    %v754 = vunpack.c.l.b16 %v250
    %v755 = vunpack.c.h.b16 %v250
    %v756 = vunpack.c.l.b16 %v251
    %v757 = vunpack.c.l.b16 %v252
    %v758 = vunpack.c.h.b16 %v252
    %v759 = vunpack.c.l.b16 %v253
    %v760 = vunpack.c.l.b16 %v254
    %v761 = vunpack.c.h.b16 %v254
    %v762 = vunpack.c.l.b16 %v255
    %v763 = vunpack.c.l.b16 %v256
    %v764 = vunpack.c.h.b16 %v256
    %v765 = vunpack.c.l.b16 %v257
    %v766 = vunpack.c.l.b16 %v258
    %v767 = vunpack.c.h.b16 %v258
    %v768 = vunpack.c.l.b16 %v259
    %v769 = vunpack.c.l.b16 %v260
    %v770 = vunpack.c.h.b16 %v260
    %v771 = vunpack.c.l.b16 %v261
    %v772 = vunpack.c.l.b16 %v262
    %v773 = vunpack.c.h.b16 %v262
    %v774 = vunpack.c.l.b16 %v263
    %v775 = vunpack.c.l.b16 %v264
    %v776 = vunpack.c.h.b16 %v264
    %v777 = vunpack.c.l.b16 %v265
    %v778 = vunpack.c.l.b16 %v266
    %v779 = vunpack.c.h.b16 %v266
    %v780 = vunpack.c.l.b16 %v267
    %v781 = vunpack.c.l.b16 %v268
    %v782 = vunpack.c.h.b16 %v268
    %v783 = vunpack.c.l.b16 %v269
    %v784 = vunpack.c.l.b16 %v270
    %v785 = vunpack.c.h.b16 %v270
    %v786 = vunpack.c.l.b16 %v271
    %v787 = vunpack.c.l.b16 %v272
    %v788 = vunpack.c.h.b16 %v272
    %v789 = vunpack.c.l.b16 %v273
    %v790 = vunpack.c.l.b16 %v274
    %v791 = vunpack.c.h.b16 %v274
    %v792 = vunpack.c.l.b16 %v275
    %v793 = vunpack.c.l.b16 %v276
    %v794 = vunpack.c.h.b16 %v276
    %v795 = vunpack.c.l.b16 %v277
    %v796 = vunpack.c.l.b16 %v278
    %v797 = vunpack.c.h.b16 %v278
    %v798 = vunpack.c.l.b16 %v279
    %v799 = vunpack.c.l.b16 %v280
    %v800 = vunpack.c.h.b16 %v280
    %v801 = vunpack.c.l.b16 %v281
    %v802 = vunpack.c.l.b16 %v282
    %v803 = vunpack.c.h.b16 %v282
    %v804 = vunpack.c.l.b16 %v283
    %v805 = vunpack.c.l.b16 %v284
    %v806 = vunpack.c.h.b16 %v284
    %v807 = vunpack.c.l.b16 %v285
    %v808 = vunpack.c.l.b16 %v286
    %v809 = vunpack.c.h.b16 %v286
    %v810 = vunpack.c.l.b16 %v287
    %v811 = vunpack.c.l.b16 %v288
    %v812 = vunpack.c.h.b16 %v288
    %v813 = vunpack.c.l.b16 %v289
    %v814 = vunpack.c.l.b16 %v290
    %v815 = vunpack.c.h.b16 %v290
    %v816 = vunpack.c.l.b16 %v291
    %v817 = vunpack.c.l.b16 %v292
    %v818 = vunpack.c.h.b16 %v292
    %v819 = vunpack.c.l.b16 %v293
    %v820 = vunpack.c.l.b16 %v294
    %v821 = vunpack.c.h.b16 %v294
    %v822 = vunpack.c.l.b16 %v295
    %v823 = vunpack.c.l.b16 %v296
    %v824 = vunpack.c.h.b16 %v296
    %v825 = vunpack.c.l.b16 %v297
    %v826 = vunpack.c.l.b16 %v298
    %v827 = vunpack.c.h.b16 %v298
    %v828 = vunpack.c.l.b16 %v299
    %v829 = vunpack.c.l.b16 %v300
    %v830 = vunpack.c.h.b16 %v300
    %v831 = vunpack.c.l.b16 %v301
    %v832 = vunpack.c.l.b16 %v302
    %v833 = vunpack.c.h.b16 %v302
    %v834 = vunpack.c.l.b16 %v303
    %v835 = vunpack.c.l.b16 %v304
    %v836 = vunpack.c.h.b16 %v304
    %v837 = vunpack.c.l.b16 %v305
    %v838 = vunpack.c.l.b16 %v306
    %v839 = vunpack.c.h.b16 %v306
    %v840 = vunpack.c.l.b16 %v307
    %v841 = vunpack.c.l.b16 %v308
    %v842 = vunpack.c.h.b16 %v308
    %v843 = vunpack.c.l.b16 %v309
    %v844 = vunpack.c.l.b16 %v310
    %v845 = vunpack.c.h.b16 %v310
    %v846 = vunpack.c.l.b16 %v311
    %v847 = vunpack.c.l.b16 %v312
    %v848 = vunpack.c.h.b16 %v312
    %v849 = vunpack.c.l.b16 %v313
    %v850 = vpack.c.b16 %v541, %v538
    %v851 = vpack.c.b16 %v542, %v539
    %v852 = vpack.c.b16 %v543, %v540
    %v853 = vpack.c.b16 %v547, %v544
    %v854 = vpack.c.b16 %v548, %v545
    %v855 = vpack.c.b16 %v549, %v546
    %v856 = vpack.c.b16 %v553, %v550
    %v857 = vpack.c.b16 %v554, %v551
    %v858 = vpack.c.b16 %v555, %v552
    %v859 = vpack.c.b16 %v559, %v556
    %v860 = vpack.c.b16 %v560, %v557
    %v861 = vpack.c.b16 %v561, %v558
    %v862 = vpack.c.b16 %v565, %v562
    %v863 = vpack.c.b16 %v566, %v563
    %v864 = vpack.c.b16 %v567, %v564
    %v865 = vpack.c.b16 %v571, %v568
    %v866 = vpack.c.b16 %v572, %v569
    %v867 = vpack.c.b16 %v573, %v570
    %v868 = vpack.c.b16 %v577, %v574
    %v869 = vpack.c.b16 %v578, %v575
    %v870 = vpack.c.b16 %v579, %v576
    %v871 = vpack.c.b16 %v583, %v580
    %v872 = vpack.c.b16 %v584, %v581
    %v873 = vpack.c.b16 %v585, %v582
    %v874 = vpack.c.b16 %v589, %v586
    %v875 = vpack.c.b16 %v590, %v587
    %v876 = vpack.c.b16 %v591, %v588
    %v877 = vpack.c.b16 %v595, %v592
    %v878 = vpack.c.b16 %v596, %v593
    %v879 = vpack.c.b16 %v597, %v594
    %v880 = vpack.c.b16 %v601, %v598
    %v881 = vpack.c.b16 %v602, %v599
    %v882 = vpack.c.b16 %v603, %v600
    %v883 = vpack.c.b16 %v607, %v604
    %v884 = vpack.c.b16 %v608, %v605
    %v885 = vpack.c.b16 %v609, %v606
    %v886 = vpack.c.b16 %v613, %v610
    %v887 = vpack.c.b16 %v614, %v611
    %v888 = vpack.c.b16 %v615, %v612
    %v889 = vpack.c.b16 %v619, %v616
    %v890 = vpack.c.b16 %v620, %v617
    %v891 = vpack.c.b16 %v621, %v618
    %v892 = vpack.c.b16 %v625, %v622
    %v893 = vpack.c.b16 %v626, %v623
    %v894 = vpack.c.b16 %v627, %v624
    %v895 = vpack.c.b16 %v631, %v628
    %v896 = vpack.c.b16 %v632, %v629
    %v897 = vpack.c.b16 %v633, %v630
    %v898 = vpack.c.b16 %v637, %v634
    %v899 = vpack.c.b16 %v638, %v635
    %v900 = vpack.c.b16 %v639, %v636
    %v901 = vpack.c.b16 %v643, %v640
    %v902 = vpack.c.b16 %v644, %v641
    %v903 = vpack.c.b16 %v645, %v642
    %v904 = vpack.c.b16 %v649, %v646
    %v905 = vpack.c.b16 %v650, %v647
    %v906 = vpack.c.b16 %v651, %v648
    %v907 = vpack.c.b16 %v655, %v652
    %v908 = vpack.c.b16 %v656, %v653
    %v909 = vpack.c.b16 %v657, %v654
    %v910 = vpack.c.b16 %v661, %v658
    %v911 = vpack.c.b16 %v662, %v659
    %v912 = vpack.c.b16 %v663, %v660
    %v913 = vpack.c.b16 %v667, %v664
    %v914 = vpack.c.b16 %v668, %v665
    %v915 = vpack.c.b16 %v669, %v666
    %v916 = vpack.c.b16 %v673, %v670
    %v917 = vpack.c.b16 %v674, %v671
    %v918 = vpack.c.b16 %v675, %v672
    %v919 = vpack.c.b16 %v679, %v676
    %v920 = vpack.c.b16 %v680, %v677
    %v921 = vpack.c.b16 %v681, %v678
    %v922 = vpack.c.b16 %v685, %v682
    %v923 = vpack.c.b16 %v686, %v683
    %v924 = vpack.c.b16 %v687, %v684
    %v925 = vpack.c.b16 %v691, %v688
    %v926 = vpack.c.b16 %v692, %v689
    %v927 = vpack.c.b16 %v693, %v690
    %v928 = vpack.c.b16 %v697, %v694
    %v929 = vpack.c.b16 %v698, %v695
    %v930 = vpack.c.b16 %v699, %v696
    %v931 = vpack.c.b16 %v703, %v700
    %v932 = vpack.c.b16 %v704, %v701
    %v933 = vpack.c.b16 %v705, %v702
    %v934 = vpack.c.b16 %v709, %v706
    %v935 = vpack.c.b16 %v710, %v707
    %v936 = vpack.c.b16 %v711, %v708
    %v937 = vpack.c.b16 %v715, %v712
    %v938 = vpack.c.b16 %v716, %v713
    %v939 = vpack.c.b16 %v717, %v714
    %v940 = vpack.c.b16 %v721, %v718
    %v941 = vpack.c.b16 %v722, %v719
    %v942 = vpack.c.b16 %v723, %v720
    %v943 = vpack.c.b16 %v727, %v724
    %v944 = vpack.c.b16 %v728, %v725
    %v945 = vpack.c.b16 %v729, %v726
    %v946 = vpack.c.b16 %v733, %v730
    %v947 = vpack.c.b16 %v734, %v731
    %v948 = vpack.c.b16 %v735, %v732
    %v949 = vpack.c.b16 %v739, %v736
    %v950 = vpack.c.b16 %v740, %v737
    %v951 = vpack.c.b16 %v741, %v738
    %v952 = vpack.c.b16 %v745, %v742
    %v953 = vpack.c.b16 %v746, %v743
    %v954 = vpack.c.b16 %v747, %v744
    %v955 = vpack.c.b16 %v751, %v748
    %v956 = vpack.c.b16 %v752, %v749
    %v957 = vpack.c.b16 %v753, %v750
    %v958 = vpack.c.b16 %v757, %v754
    %v959 = vpack.c.b16 %v758, %v755
    %v960 = vpack.c.b16 %v759, %v756
    %v961 = vpack.c.b16 %v763, %v760
    %v962 = vpack.c.b16 %v764, %v761
    %v963 = vpack.c.b16 %v765, %v762
    %v964 = vpack.c.b16 %v769, %v766
    %v965 = vpack.c.b16 %v770, %v767
    %v966 = vpack.c.b16 %v771, %v768
    %v967 = vpack.c.b16 %v775, %v772
    %v968 = vpack.c.b16 %v776, %v773
    %v969 = vpack.c.b16 %v777, %v774
    %v970 = vpack.c.b16 %v781, %v778
    %v971 = vpack.c.b16 %v782, %v779
    %v972 = vpack.c.b16 %v783, %v780
    %v973 = vpack.c.b16 %v787, %v784
    %v974 = vpack.c.b16 %v788, %v785
    %v975 = vpack.c.b16 %v789, %v786
    %v976 = vpack.c.b16 %v793, %v790
    %v977 = vpack.c.b16 %v794, %v791
    %v978 = vpack.c.b16 %v795, %v792
    %v979 = vpack.c.b16 %v799, %v796
    %v980 = vpack.c.b16 %v800, %v797
    %v981 = vpack.c.b16 %v801, %v798
    %v982 = vpack.c.b16 %v805, %v802
    %v983 = vpack.c.b16 %v806, %v803
    %v984 = vpack.c.b16 %v807, %v804
    %v985 = vpack.c.b16 %v811, %v808
    %v986 = vpack.c.b16 %v812, %v809
    %v987 = vpack.c.b16 %v813, %v810
    %v988 = vpack.c.b16 %v817, %v814
    %v989 = vpack.c.b16 %v818, %v815
    %v990 = vpack.c.b16 %v819, %v816
    %v991 = vpack.c.b16 %v823, %v820
    %v992 = vpack.c.b16 %v824, %v821
    %v993 = vpack.c.b16 %v825, %v822
    %v994 = vpack.c.b16 %v829, %v826
    %v995 = vpack.c.b16 %v830, %v827
    %v996 = vpack.c.b16 %v831, %v828
    %v997 = vpack.c.b16 %v835, %v832
    %v998 = vpack.c.b16 %v836, %v833
    %v999 = vpack.c.b16 %v837, %v834
    %v1000 = vpack.c.b16 %v841, %v838
    %v1001 = vpack.c.b16 %v842, %v839
    %v1002 = vpack.c.b16 %v843, %v840
    %v1003 = vpack.c.b16 %v847, %v844
    %v1004 = vpack.c.b16 %v848, %v845
    %v1005 = vpack.c.b16 %v849, %v846
    %vm1162 = vcmask 523264
    %v1164 = vsel %vm1162, %v105, 0
    %1166 = vmatprep.subr.bf16.mxu0 %v872
    %1167 = vmatpush1.bf16.msra.mxu0 %v871
    %1168 = vmatprep.subr.bf16.mxu0 %v869
    %1169 = vmatpush1.bf16.msra.mxu0 %v868
    %1170 = vmatprep.subr.bf16.mxu0 %v866
    %1171 = vmatpush1.bf16.msra.mxu0 %v865
    %1172 = vmatprep.subr.bf16.mxu0 %v863
    %1173 = vmatpush1.bf16.msra.mxu0 %v862
    %1174 = vmatprep.subr.bf16.mxu0 %v860
    %1175 = vmatpush1.bf16.msra.mxu0 %v859
    %1176 = vmatprep.subr.bf16.mxu0 %v857
    %1177 = vmatpush1.bf16.msra.mxu0 %v856
    %1178 = vmatprep.subr.bf16.mxu0 %v854
    %1179 = vmatpush1.bf16.msra.mxu0 %v853
    %1180 = vmatprep.subr.bf16.mxu0 %v851
    %1181 = vmatpush1.bf16.msra.mxu0 %v850
    %1182 = vmatprep.subr.bf16.mxu0 %v896
    %1183 = vmatpush2.bf16.msra.mxu0 %v895
    %1184 = vmatprep.subr.bf16.mxu0 %v893
    %1185 = vmatpush2.bf16.msra.mxu0 %v892
    %1186 = vmatprep.subr.bf16.mxu0 %v890
    %1187 = vmatpush2.bf16.msra.mxu0 %v889
    %1188 = vmatprep.subr.bf16.mxu0 %v887
    %1189 = vmatpush2.bf16.msra.mxu0 %v886
    %1190 = vmatprep.subr.bf16.mxu0 %v884
    %1191 = vmatpush2.bf16.msra.mxu0 %v883
    %1192 = vmatprep.subr.bf16.mxu0 %v881
    %1193 = vmatpush2.bf16.msra.mxu0 %v880
    %1194 = vmatprep.subr.bf16.mxu0 %v878
    %1195 = vmatpush2.bf16.msra.mxu0 %v877
    %1196 = vmatprep.subr.bf16.mxu0 %v875
    %1197 = vmatpush2.bf16.msra.mxu0 %v874
    %1198 = vmatprep.mubr.bf16.mxu0 %v100
    %1199 = vmatmul.mubr.bf16.gmra.mxu0 %v99
    %v1200 = vpop.f32.mrf.mxu0
    %v1201 = vadd.f32 %v318, %v1200
    %v1202 = vpop.f32.mrf.mxu0
    %v1203 = vadd.f32 %v322, %v1202
    %v1204 = vpop.f32.mrf.mxu0
    %v1205 = vpop.f32.mrf.mxu0
    %1206 = vdwg.mxu0
    %1207 = vmatprep.subr.bf16.mxu0 %v920
    %1208 = vmatpush1.bf16.msra.mxu0 %v919
    %1209 = vmatprep.subr.bf16.mxu0 %v917
    %1210 = vmatpush1.bf16.msra.mxu0 %v916
    %1211 = vmatprep.subr.bf16.mxu0 %v914
    %1212 = vmatpush1.bf16.msra.mxu0 %v913
    %1213 = vmatprep.subr.bf16.mxu0 %v911
    %1214 = vmatpush1.bf16.msra.mxu0 %v910
    %1215 = vmatprep.subr.bf16.mxu0 %v908
    %1216 = vmatpush1.bf16.msra.mxu0 %v907
    %1217 = vmatprep.subr.bf16.mxu0 %v905
    %1218 = vmatpush1.bf16.msra.mxu0 %v904
    %1219 = vmatprep.subr.bf16.mxu0 %v902
    %1220 = vmatpush1.bf16.msra.mxu0 %v901
    %1221 = vmatprep.subr.bf16.mxu0 %v899
    %1222 = vmatpush1.bf16.msra.mxu0 %v898
    %1223 = vmatprep.subr.bf16.mxu0 %v944
    %1224 = vmatpush2.bf16.msra.mxu0 %v943
    %1225 = vmatprep.subr.bf16.mxu0 %v941
    %1226 = vmatpush2.bf16.msra.mxu0 %v940
    %1227 = vmatprep.subr.bf16.mxu0 %v938
    %1228 = vmatpush2.bf16.msra.mxu0 %v937
    %1229 = vmatprep.subr.bf16.mxu0 %v935
    %1230 = vmatpush2.bf16.msra.mxu0 %v934
    %1231 = vmatprep.subr.bf16.mxu0 %v932
    %1232 = vmatpush2.bf16.msra.mxu0 %v931
    %1233 = vmatprep.subr.bf16.mxu0 %v929
    %1234 = vmatpush2.bf16.msra.mxu0 %v928
    %1235 = vmatprep.subr.bf16.mxu0 %v926
    %1236 = vmatpush2.bf16.msra.mxu0 %v925
    %1237 = vmatprep.subr.bf16.mxu0 %v923
    %1238 = vmatpush2.bf16.msra.mxu0 %v922
    %1239 = vmatprep.mubr.bf16.mxu0 %v102
    %1240 = vmatmul.mubr.bf16.gmra.mxu0 %v101
    %v1241 = vpop.f32.mrf.mxu0
    %v1242 = vadd.f32 %v1201, %v1241
    %v1243 = vpop.f32.mrf.mxu0
    %v1244 = vadd.f32 %v1203, %v1243
    %v1245 = vpop.f32.mrf.mxu0
    %v1246 = vpop.f32.mrf.mxu0
    %1247 = vdwg.mxu0
    %1248 = vmatprep.subr.bf16.mxu0 %v968
    %1249 = vmatpush1.bf16.msra.mxu0 %v967
    %1250 = vmatprep.subr.bf16.mxu0 %v965
    %1251 = vmatpush1.bf16.msra.mxu0 %v964
    %1252 = vmatprep.subr.bf16.mxu0 %v962
    %1253 = vmatpush1.bf16.msra.mxu0 %v961
    %1254 = vmatprep.subr.bf16.mxu0 %v959
    %1255 = vmatpush1.bf16.msra.mxu0 %v958
    %1256 = vmatprep.subr.bf16.mxu0 %v956
    %1257 = vmatpush1.bf16.msra.mxu0 %v955
    %1258 = vmatprep.subr.bf16.mxu0 %v953
    %1259 = vmatpush1.bf16.msra.mxu0 %v952
    %1260 = vmatprep.subr.bf16.mxu0 %v950
    %1261 = vmatpush1.bf16.msra.mxu0 %v949
    %1262 = vmatprep.subr.bf16.mxu0 %v947
    %1263 = vmatpush1.bf16.msra.mxu0 %v946
    %1264 = vmatprep.subr.bf16.mxu0 %v992
    %1265 = vmatpush2.bf16.msra.mxu0 %v991
    %1266 = vmatprep.subr.bf16.mxu0 %v989
    %1267 = vmatpush2.bf16.msra.mxu0 %v988
    %1268 = vmatprep.subr.bf16.mxu0 %v986
    %1269 = vmatpush2.bf16.msra.mxu0 %v985
    %1270 = vmatprep.subr.bf16.mxu0 %v983
    %1271 = vmatpush2.bf16.msra.mxu0 %v982
    %1272 = vmatprep.subr.bf16.mxu0 %v980
    %1273 = vmatpush2.bf16.msra.mxu0 %v979
    %1274 = vmatprep.subr.bf16.mxu0 %v977
    %1275 = vmatpush2.bf16.msra.mxu0 %v976
    %1276 = vmatprep.subr.bf16.mxu0 %v974
    %1277 = vmatpush2.bf16.msra.mxu0 %v973
    %1278 = vmatprep.subr.bf16.mxu0 %v971
    %1279 = vmatpush2.bf16.msra.mxu0 %v970
    %1280 = vmatprep.mubr.bf16.mxu0 %v104
    %1281 = vmatmul.mubr.bf16.gmra.mxu0 %v103
    %v1282 = vpop.f32.mrf.mxu0
    %v1283 = vadd.f32 %v1242, %v1282
    %v1284 = vpop.f32.mrf.mxu0
    %v1285 = vadd.f32 %v1244, %v1284
    %v1286 = vpop.f32.mrf.mxu0
    %v1287 = vpop.f32.mrf.mxu0
    %1288 = vdwg.mxu0
    %1289 = vmatprep.subr.bf16.mxu0 0
    %1290 = vmatpush1.bf16.msra.mxu0 0
    %1291 = vmatprep.subr.bf16.mxu0 0
    %1292 = vmatpush1.bf16.msra.mxu0 0
    %1293 = vmatprep.subr.bf16.mxu0 0
    %1294 = vmatpush1.bf16.msra.mxu0 0
    %1295 = vmatprep.subr.bf16.mxu0 0
    %1296 = vmatpush1.bf16.msra.mxu0 0
    %1297 = vmatprep.subr.bf16.mxu0 %v1004
    %1298 = vmatpush1.bf16.msra.mxu0 %v1003
    %1299 = vmatprep.subr.bf16.mxu0 %v1001
    %1300 = vmatpush1.bf16.msra.mxu0 %v1000
    %1301 = vmatprep.subr.bf16.mxu0 %v998
    %1302 = vmatpush1.bf16.msra.mxu0 %v997
    %1303 = vmatprep.subr.bf16.mxu0 %v995
    %1304 = vmatpush1.bf16.msra.mxu0 %v994
    %1305 = vmatprep.subr.bf16.mxu0 0
    %1306 = vmatpush2.bf16.msra.mxu0 0
    %1307 = vmatprep.subr.bf16.mxu0 0
    %1308 = vmatpush2.bf16.msra.mxu0 0
    %1309 = vmatprep.subr.bf16.mxu0 0
    %1310 = vmatpush2.bf16.msra.mxu0 0
    %1311 = vmatprep.subr.bf16.mxu0 0
    %1312 = vmatpush2.bf16.msra.mxu0 0
    %1313 = vmatprep.subr.bf16.mxu0 0
    %1314 = vmatpush2.bf16.msra.mxu0 0
    %1315 = vmatprep.subr.bf16.mxu0 0
    %1316 = vmatpush2.bf16.msra.mxu0 0
    %1317 = vmatprep.subr.bf16.mxu0 0
    %1318 = vmatpush2.bf16.msra.mxu0 0
    %1319 = vmatprep.subr.bf16.mxu0 0
    %1320 = vmatpush2.bf16.msra.mxu0 0
    %1321 = vmatprep.mubr.bf16.mxu0 0
    %1322 = vmatmul.mubr.bf16.gmra.mxu0 %v1164
    %v1323 = vpop.f32.mrf.mxu0
    %v1324 = vadd.f32 %v1283, %v1323
    %v1325 = vpop.f32.mrf.mxu0
    %v1326 = vadd.f32 %v1285, %v1325
    %v1327 = vpop.f32.mrf.mxu0
    %v1328 = vpop.f32.mrf.mxu0
    %1329 = vdwg.mxu0
    %1330 = vmatprep.subr.bf16.mxu0 0
    %1331 = vmatpush1.bf16.msra.mxu0 %v873
    %1332 = vmatprep.subr.bf16.mxu0 0
    %1333 = vmatpush1.bf16.msra.mxu0 %v870
    %1334 = vmatprep.subr.bf16.mxu0 0
    %1335 = vmatpush1.bf16.msra.mxu0 %v867
    %1336 = vmatprep.subr.bf16.mxu0 0
    %1337 = vmatpush1.bf16.msra.mxu0 %v864
    %1338 = vmatprep.subr.bf16.mxu0 0
    %1339 = vmatpush1.bf16.msra.mxu0 %v861
    %1340 = vmatprep.subr.bf16.mxu0 0
    %1341 = vmatpush1.bf16.msra.mxu0 %v858
    %1342 = vmatprep.subr.bf16.mxu0 0
    %1343 = vmatpush1.bf16.msra.mxu0 %v855
    %1344 = vmatprep.subr.bf16.mxu0 0
    %1345 = vmatpush1.bf16.msra.mxu0 %v852
    %1346 = vmatprep.subr.bf16.mxu0 0
    %1347 = vmatpush2.bf16.msra.mxu0 %v897
    %1348 = vmatprep.subr.bf16.mxu0 0
    %1349 = vmatpush2.bf16.msra.mxu0 %v894
    %1350 = vmatprep.subr.bf16.mxu0 0
    %1351 = vmatpush2.bf16.msra.mxu0 %v891
    %1352 = vmatprep.subr.bf16.mxu0 0
    %1353 = vmatpush2.bf16.msra.mxu0 %v888
    %1354 = vmatprep.subr.bf16.mxu0 0
    %1355 = vmatpush2.bf16.msra.mxu0 %v885
    %1356 = vmatprep.subr.bf16.mxu0 0
    %1357 = vmatpush2.bf16.msra.mxu0 %v882
    %1358 = vmatprep.subr.bf16.mxu0 0
    %1359 = vmatpush2.bf16.msra.mxu0 %v879
    %1360 = vmatprep.subr.bf16.mxu0 0
    %1361 = vmatpush2.bf16.msra.mxu0 %v876
    %1362 = vmatprep.mubr.bf16.mxu0 %v100
    %1363 = vmatmul.mubr.bf16.gmra.mxu0 %v99
    %v1364 = vpop.f32.mrf.mxu0
    %v1365 = vadd.f32 %v326, %v1364
    %v1366 = vpop.f32.mrf.mxu0
    %v1367 = vpop.f32.mrf.mxu0
    %v1368 = vpop.f32.mrf.mxu0
    %1369 = vdwg.mxu0
    %1370 = vmatprep.subr.bf16.mxu0 0
    %1371 = vmatpush1.bf16.msra.mxu0 %v921
    %1372 = vmatprep.subr.bf16.mxu0 0
    %1373 = vmatpush1.bf16.msra.mxu0 %v918
    %1374 = vmatprep.subr.bf16.mxu0 0
    %1375 = vmatpush1.bf16.msra.mxu0 %v915
    %1376 = vmatprep.subr.bf16.mxu0 0
    %1377 = vmatpush1.bf16.msra.mxu0 %v912
    %1378 = vmatprep.subr.bf16.mxu0 0
    %1379 = vmatpush1.bf16.msra.mxu0 %v909
    %1380 = vmatprep.subr.bf16.mxu0 0
    %1381 = vmatpush1.bf16.msra.mxu0 %v906
    %1382 = vmatprep.subr.bf16.mxu0 0
    %1383 = vmatpush1.bf16.msra.mxu0 %v903
    %1384 = vmatprep.subr.bf16.mxu0 0
    %1385 = vmatpush1.bf16.msra.mxu0 %v900
    %1386 = vmatprep.subr.bf16.mxu0 0
    %1387 = vmatpush2.bf16.msra.mxu0 %v945
    %1388 = vmatprep.subr.bf16.mxu0 0
    %1389 = vmatpush2.bf16.msra.mxu0 %v942
    %1390 = vmatprep.subr.bf16.mxu0 0
    %1391 = vmatpush2.bf16.msra.mxu0 %v939
    %1392 = vmatprep.subr.bf16.mxu0 0
    %1393 = vmatpush2.bf16.msra.mxu0 %v936
    %1394 = vmatprep.subr.bf16.mxu0 0
    %1395 = vmatpush2.bf16.msra.mxu0 %v933
    %1396 = vmatprep.subr.bf16.mxu0 0
    %1397 = vmatpush2.bf16.msra.mxu0 %v930
    %1398 = vmatprep.subr.bf16.mxu0 0
    %1399 = vmatpush2.bf16.msra.mxu0 %v927
    %1400 = vmatprep.subr.bf16.mxu0 0
    %1401 = vmatpush2.bf16.msra.mxu0 %v924
    %1402 = vmatprep.mubr.bf16.mxu0 %v102
    %1403 = vmatmul.mubr.bf16.gmra.mxu0 %v101
    %v1404 = vpop.f32.mrf.mxu0
    %v1405 = vadd.f32 %v1365, %v1404
    %v1406 = vpop.f32.mrf.mxu0
    %v1407 = vpop.f32.mrf.mxu0
    %v1408 = vpop.f32.mrf.mxu0
    %1409 = vdwg.mxu0
    %1410 = vmatprep.subr.bf16.mxu0 0
    %1411 = vmatpush1.bf16.msra.mxu0 %v969
    %1412 = vmatprep.subr.bf16.mxu0 0
    %1413 = vmatpush1.bf16.msra.mxu0 %v966
    %1414 = vmatprep.subr.bf16.mxu0 0
    %1415 = vmatpush1.bf16.msra.mxu0 %v963
    %1416 = vmatprep.subr.bf16.mxu0 0
    %1417 = vmatpush1.bf16.msra.mxu0 %v960
    %1418 = vmatprep.subr.bf16.mxu0 0
    %1419 = vmatpush1.bf16.msra.mxu0 %v957
    %1420 = vmatprep.subr.bf16.mxu0 0
    %1421 = vmatpush1.bf16.msra.mxu0 %v954
    %1422 = vmatprep.subr.bf16.mxu0 0
    %1423 = vmatpush1.bf16.msra.mxu0 %v951
    %1424 = vmatprep.subr.bf16.mxu0 0
    %1425 = vmatpush1.bf16.msra.mxu0 %v948
    %1426 = vmatprep.subr.bf16.mxu0 0
    %1427 = vmatpush2.bf16.msra.mxu0 %v993
    %1428 = vmatprep.subr.bf16.mxu0 0
    %1429 = vmatpush2.bf16.msra.mxu0 %v990
    %1430 = vmatprep.subr.bf16.mxu0 0
    %1431 = vmatpush2.bf16.msra.mxu0 %v987
    %1432 = vmatprep.subr.bf16.mxu0 0
    %1433 = vmatpush2.bf16.msra.mxu0 %v984
    %1434 = vmatprep.subr.bf16.mxu0 0
    %1435 = vmatpush2.bf16.msra.mxu0 %v981
    %1436 = vmatprep.subr.bf16.mxu0 0
    %1437 = vmatpush2.bf16.msra.mxu0 %v978
    %1438 = vmatprep.subr.bf16.mxu0 0
    %1439 = vmatpush2.bf16.msra.mxu0 %v975
    %1440 = vmatprep.subr.bf16.mxu0 0
    %1441 = vmatpush2.bf16.msra.mxu0 %v972
    %1442 = vmatprep.mubr.bf16.mxu0 %v104
    %1443 = vmatmul.mubr.bf16.gmra.mxu0 %v103
    %v1444 = vpop.f32.mrf.mxu0
    %v1445 = vadd.f32 %v1405, %v1444
    %v1446 = vpop.f32.mrf.mxu0
    %v1447 = vpop.f32.mrf.mxu0
    %v1448 = vpop.f32.mrf.mxu0
    %1449 = vdwg.mxu0
    %1450 = vmatprep.subr.bf16.mxu0 0
    %1451 = vmatpush1.bf16.msra.mxu0 0
    %1452 = vmatprep.subr.bf16.mxu0 0
    %1453 = vmatpush1.bf16.msra.mxu0 0
    %1454 = vmatprep.subr.bf16.mxu0 0
    %1455 = vmatpush1.bf16.msra.mxu0 0
    %1456 = vmatprep.subr.bf16.mxu0 0
    %1457 = vmatpush1.bf16.msra.mxu0 0
    %1458 = vmatprep.subr.bf16.mxu0 0
    %1459 = vmatpush1.bf16.msra.mxu0 %v1005
    %1460 = vmatprep.subr.bf16.mxu0 0
    %1461 = vmatpush1.bf16.msra.mxu0 %v1002
    %1462 = vmatprep.subr.bf16.mxu0 0
    %1463 = vmatpush1.bf16.msra.mxu0 %v999
    %1464 = vmatprep.subr.bf16.mxu0 0
    %1465 = vmatpush1.bf16.msra.mxu0 %v996
    %1466 = vmatprep.subr.bf16.mxu0 0
    %1467 = vmatpush2.bf16.msra.mxu0 0
    %1468 = vmatprep.subr.bf16.mxu0 0
    %1469 = vmatpush2.bf16.msra.mxu0 0
    %1470 = vmatprep.subr.bf16.mxu0 0
    %1471 = vmatpush2.bf16.msra.mxu0 0
    %1472 = vmatprep.subr.bf16.mxu0 0
    %1473 = vmatpush2.bf16.msra.mxu0 0
    %1474 = vmatprep.subr.bf16.mxu0 0
    %1475 = vmatpush2.bf16.msra.mxu0 0
    %1476 = vmatprep.subr.bf16.mxu0 0
    %1477 = vmatpush2.bf16.msra.mxu0 0
    %1478 = vmatprep.subr.bf16.mxu0 0
    %1479 = vmatpush2.bf16.msra.mxu0 0
    %1480 = vmatprep.subr.bf16.mxu0 0
    %1481 = vmatpush2.bf16.msra.mxu0 0
    %1482 = vmatprep.mubr.bf16.mxu0 0
    %1483 = vmatmul.mubr.bf16.gmra.mxu0 %v1164
    %v1484 = vpop.f32.mrf.mxu0
    %v1485 = vadd.f32 %v1445, %v1484
    %v1486 = vpop.f32.mrf.mxu0
    %v1487 = vpop.f32.mrf.mxu0
    %v1488 = vpop.f32.mrf.mxu0
    %1489 = vdwg.mxu0
    %v1522 = vunpack.c.l.b16 %v55
    %v1523 = vunpack.c.h.b16 %v55
    %v1524 = vunpack.c.l.b16 %v56
    %v1525 = vunpack.c.l.b16 %v57
    %v1526 = vunpack.c.h.b16 %v57
    %v1527 = vunpack.c.l.b16 %v58
    %v1528 = vunpack.c.l.b16 %v59
    %v1529 = vunpack.c.h.b16 %v59
    %v1530 = vunpack.c.l.b16 %v60
    %v1531 = vunpack.c.l.b16 %v61
    %v1532 = vunpack.c.h.b16 %v61
    %v1533 = vunpack.c.l.b16 %v62
    %v1534 = vunpack.c.l.b16 %v63
    %v1535 = vunpack.c.h.b16 %v63
    %v1536 = vunpack.c.l.b16 %v64
    %v1537 = vunpack.c.l.b16 %v65
    %v1538 = vunpack.c.h.b16 %v65
    %v1539 = vunpack.c.l.b16 %v66
    %v1540 = vunpack.c.l.b16 %v67
    %v1541 = vunpack.c.h.b16 %v67
    %v1542 = vunpack.c.l.b16 %v68
    %v1543 = vunpack.c.l.b16 %v69
    %v1544 = vunpack.c.h.b16 %v69
    %v1545 = vunpack.c.l.b16 %v70
    %v1546 = vunpack.c.l.b16 %v71
    %v1547 = vunpack.c.h.b16 %v71
    %v1548 = vunpack.c.l.b16 %v72
    %v1549 = vunpack.c.l.b16 %v73
    %v1550 = vunpack.c.h.b16 %v73
    %v1551 = vunpack.c.l.b16 %v74
    %v1552 = vunpack.c.l.b16 %v75
    %v1553 = vunpack.c.h.b16 %v75
    %v1554 = vunpack.c.l.b16 %v76
    %v1555 = vunpack.c.l.b16 %v77
    %v1556 = vunpack.c.h.b16 %v77
    %v1557 = vunpack.c.l.b16 %v78
    %v1558 = vunpack.c.l.b16 %v79
    %v1559 = vunpack.c.h.b16 %v79
    %v1560 = vunpack.c.l.b16 %v80
    %v1561 = vunpack.c.l.b16 %v81
    %v1562 = vunpack.c.h.b16 %v81
    %v1563 = vunpack.c.l.b16 %v82
    %v1564 = vunpack.c.l.b16 %v83
    %v1565 = vunpack.c.h.b16 %v83
    %v1566 = vunpack.c.l.b16 %v84
    %v1567 = vunpack.c.l.b16 %v85
    %v1568 = vunpack.c.h.b16 %v85
    %v1569 = vunpack.c.l.b16 %v86
    %v1570 = vpack.c.b16 %v1525, %v1522
    %v1571 = vpack.c.b16 %v1526, %v1523
    %v1572 = vpack.c.b16 %v1527, %v1524
    %v1573 = vpack.c.b16 %v1531, %v1528
    %v1574 = vpack.c.b16 %v1532, %v1529
    %v1575 = vpack.c.b16 %v1533, %v1530
    %v1576 = vpack.c.b16 %v1537, %v1534
    %v1577 = vpack.c.b16 %v1538, %v1535
    %v1578 = vpack.c.b16 %v1539, %v1536
    %v1579 = vpack.c.b16 %v1543, %v1540
    %v1580 = vpack.c.b16 %v1544, %v1541
    %v1581 = vpack.c.b16 %v1545, %v1542
    %v1582 = vpack.c.b16 %v1549, %v1546
    %v1583 = vpack.c.b16 %v1550, %v1547
    %v1584 = vpack.c.b16 %v1551, %v1548
    %v1585 = vpack.c.b16 %v1555, %v1552
    %v1586 = vpack.c.b16 %v1556, %v1553
    %v1587 = vpack.c.b16 %v1557, %v1554
    %v1588 = vpack.c.b16 %v1561, %v1558
    %v1589 = vpack.c.b16 %v1562, %v1559
    %v1590 = vpack.c.b16 %v1563, %v1560
    %v1591 = vpack.c.b16 %v1567, %v1564
    %v1592 = vpack.c.b16 %v1568, %v1565
    %v1593 = vpack.c.b16 %v1569, %v1566
    %v1619 = vlaneseq
    %v1620 = vshrl.u32 %v1619, 7
    %v1621 = vsub.s32 0, %v1620
    %v1622 = vrot.slane %v89, %v1621
    %v1623 = vlaneseq
    %v1624 = vshrl.u32 %v1623, 7
    %v1625 = vsub.s32 1, %v1624
    %v1626 = vrot.slane %v89, %v1625
    %v1627 = vlaneseq
    %v1628 = vshrl.u32 %v1627, 7
    %v1629 = vsub.s32 2, %v1628
    %v1630 = vrot.slane %v89, %v1629
    %1634 = vmatprep.subr.bf16.mxu0 %v1592
    %1635 = vmatpush1.bf16.msra.mxu0 %v1591
    %1636 = vmatprep.subr.bf16.mxu0 %v1589
    %1637 = vmatpush1.bf16.msra.mxu0 %v1588
    %1638 = vmatprep.subr.bf16.mxu0 %v1586
    %1639 = vmatpush1.bf16.msra.mxu0 %v1585
    %1640 = vmatprep.subr.bf16.mxu0 %v1583
    %1641 = vmatpush1.bf16.msra.mxu0 %v1582
    %1642 = vmatprep.subr.bf16.mxu0 %v1580
    %1643 = vmatpush1.bf16.msra.mxu0 %v1579
    %1644 = vmatprep.subr.bf16.mxu0 %v1577
    %1645 = vmatpush1.bf16.msra.mxu0 %v1576
    %1646 = vmatprep.subr.bf16.mxu0 %v1574
    %1647 = vmatpush1.bf16.msra.mxu0 %v1573
    %1648 = vmatprep.subr.bf16.mxu0 %v1571
    %1649 = vmatpush1.bf16.msra.mxu0 %v1570
    %1650 = vmatprep.subr.bf16.mxu0 0
    %1651 = vmatpush2.bf16.msra.mxu0 0
    %1652 = vmatprep.subr.bf16.mxu0 0
    %1653 = vmatpush2.bf16.msra.mxu0 0
    %1654 = vmatprep.subr.bf16.mxu0 0
    %1655 = vmatpush2.bf16.msra.mxu0 0
    %1656 = vmatprep.subr.bf16.mxu0 0
    %1657 = vmatpush2.bf16.msra.mxu0 0
    %1658 = vmatprep.subr.bf16.mxu0 0
    %1659 = vmatpush2.bf16.msra.mxu0 0
    %1660 = vmatprep.subr.bf16.mxu0 0
    %1661 = vmatpush2.bf16.msra.mxu0 0
    %1662 = vmatprep.subr.bf16.mxu0 0
    %1663 = vmatpush2.bf16.msra.mxu0 0
    %1664 = vmatprep.subr.bf16.mxu0 0
    %1665 = vmatpush2.bf16.msra.mxu0 0
    %1666 = vmatprep.mubr.bf16.mxu0 0
    %1667 = vmatmul.mubr.bf16.gmra.mxu0 0
    %v1668 = vpop.f32.mrf.mxu0
    %v1669 = vadd.f32 %v1622, %v1668
    %v1670 = vpop.f32.mrf.mxu0
    %v1671 = vadd.f32 %v1626, %v1670
    %v1672 = vpop.f32.mrf.mxu0
    %v1673 = vpop.f32.mrf.mxu0
    %1674 = vdwg.mxu0
    %1675 = vmatprep.subr.bf16.mxu0 0
    %1676 = vmatpush1.bf16.msra.mxu0 %v1593
    %1677 = vmatprep.subr.bf16.mxu0 0
    %1678 = vmatpush1.bf16.msra.mxu0 %v1590
    %1679 = vmatprep.subr.bf16.mxu0 0
    %1680 = vmatpush1.bf16.msra.mxu0 %v1587
    %1681 = vmatprep.subr.bf16.mxu0 0
    %1682 = vmatpush1.bf16.msra.mxu0 %v1584
    %1683 = vmatprep.subr.bf16.mxu0 0
    %1684 = vmatpush1.bf16.msra.mxu0 %v1581
    %1685 = vmatprep.subr.bf16.mxu0 0
    %1686 = vmatpush1.bf16.msra.mxu0 %v1578
    %1687 = vmatprep.subr.bf16.mxu0 0
    %1688 = vmatpush1.bf16.msra.mxu0 %v1575
    %1689 = vmatprep.subr.bf16.mxu0 0
    %1690 = vmatpush1.bf16.msra.mxu0 %v1572
    %1691 = vmatprep.subr.bf16.mxu0 0
    %1692 = vmatpush2.bf16.msra.mxu0 0
    %1693 = vmatprep.subr.bf16.mxu0 0
    %1694 = vmatpush2.bf16.msra.mxu0 0
    %1695 = vmatprep.subr.bf16.mxu0 0
    %1696 = vmatpush2.bf16.msra.mxu0 0
    %1697 = vmatprep.subr.bf16.mxu0 0
    %1698 = vmatpush2.bf16.msra.mxu0 0
    %1699 = vmatprep.subr.bf16.mxu0 0
    %1700 = vmatpush2.bf16.msra.mxu0 0
    %1701 = vmatprep.subr.bf16.mxu0 0
    %1702 = vmatpush2.bf16.msra.mxu0 0
    %1703 = vmatprep.subr.bf16.mxu0 0
    %1704 = vmatpush2.bf16.msra.mxu0 0
    %1705 = vmatprep.subr.bf16.mxu0 0
    %1706 = vmatpush2.bf16.msra.mxu0 0
    %1707 = vmatprep.mubr.bf16.mxu0 0
    %1708 = vmatmul.mubr.bf16.gmra.mxu0 0
    %v1709 = vpop.f32.mrf.mxu0
    %v1710 = vadd.f32 %v1630, %v1709
    %v1711 = vpop.f32.mrf.mxu0
    %v1712 = vpop.f32.mrf.mxu0
    %v1713 = vpop.f32.mrf.mxu0
    %1714 = vdwg.mxu0
    %v1715 = vadd.f32 %v1324, %v1669
    %v1716 = vxor.u32 %v1715, 2147483648
    %v1717 = vmul.f32 %v1716, 1.442695
    %v1718 = vpow.pop %v1717
    %v1719 = vadd.f32 %v1718, 1.0
    %v1720 = vrcp.pop %v1719
    %v1721 = vmul.f32 1.0, %v1720
    %v1722 = vadd.f32 %v1326, %v1671
    %v1723 = vxor.u32 %v1722, 2147483648
    %v1724 = vmul.f32 %v1723, 1.442695
    %v1725 = vpow.pop %v1724
    %v1726 = vadd.f32 %v1725, 1.0
    %v1727 = vrcp.pop %v1726
    %v1728 = vmul.f32 1.0, %v1727
    %v1729 = vmul.f32 %v1721, %v1710
    %v1730 = vadd.f32 %v1485, %v1729
    %v1731 = vtanh.pop %v1730
    %v1732 = vsub.f32 1.0, %v1728
    %v1733 = vmul.f32 %v1732, %v1731
    %v1734 = vmul.f32 %v1728, 0.0
    %v1735 = vadd.f32 %v1733, %v1734
    %v1736 = vmul.f32 %v90, %v1735
    %v1737 = vadd.f32 %v1736, 0.0
    %v1738 = vpack.c.bf16 %v1735, %v1735
    %1739 = vmatprep.subr.bf16.mxu0 %v1592
    %1740 = vmatpush1.bf16.msra.mxu0 %v1591
    %1741 = vmatprep.subr.bf16.mxu0 %v1589
    %1742 = vmatpush1.bf16.msra.mxu0 %v1588
    %1743 = vmatprep.subr.bf16.mxu0 %v1586
    %1744 = vmatpush1.bf16.msra.mxu0 %v1585
    %1745 = vmatprep.subr.bf16.mxu0 %v1583
    %1746 = vmatpush1.bf16.msra.mxu0 %v1582
    %1747 = vmatprep.subr.bf16.mxu0 %v1580
    %1748 = vmatpush1.bf16.msra.mxu0 %v1579
    %1749 = vmatprep.subr.bf16.mxu0 %v1577
    %1750 = vmatpush1.bf16.msra.mxu0 %v1576
    %1751 = vmatprep.subr.bf16.mxu0 %v1574
    %1752 = vmatpush1.bf16.msra.mxu0 %v1573
    %1753 = vmatprep.subr.bf16.mxu0 %v1571
    %1754 = vmatpush1.bf16.msra.mxu0 %v1570
    %1755 = vmatprep.subr.bf16.mxu0 0
    %1756 = vmatpush2.bf16.msra.mxu0 0
    %1757 = vmatprep.subr.bf16.mxu0 0
    %1758 = vmatpush2.bf16.msra.mxu0 0
    %1759 = vmatprep.subr.bf16.mxu0 0
    %1760 = vmatpush2.bf16.msra.mxu0 0
    %1761 = vmatprep.subr.bf16.mxu0 0
    %1762 = vmatpush2.bf16.msra.mxu0 0
    %1763 = vmatprep.subr.bf16.mxu0 0
    %1764 = vmatpush2.bf16.msra.mxu0 0
    %1765 = vmatprep.subr.bf16.mxu0 0
    %1766 = vmatpush2.bf16.msra.mxu0 0
    %1767 = vmatprep.subr.bf16.mxu0 0
    %1768 = vmatpush2.bf16.msra.mxu0 0
    %1769 = vmatprep.subr.bf16.mxu0 0
    %1770 = vmatpush2.bf16.msra.mxu0 0
    %1771 = vmatprep.mubr.bf16.mxu0 0
    %1772 = vmatmul.mubr.bf16.gmra.mxu0 %v1738
    %v1773 = vpop.f32.mrf.mxu0
    %v1774 = vadd.f32 %v1622, %v1773
    %v1775 = vpop.f32.mrf.mxu0
    %v1776 = vadd.f32 %v1626, %v1775
    %v1777 = vpop.f32.mrf.mxu0
    %v1778 = vpop.f32.mrf.mxu0
    %1779 = vdwg.mxu0
    %1780 = vmatprep.subr.bf16.mxu0 0
    %1781 = vmatpush1.bf16.msra.mxu0 %v1593
    %1782 = vmatprep.subr.bf16.mxu0 0
    %1783 = vmatpush1.bf16.msra.mxu0 %v1590
    %1784 = vmatprep.subr.bf16.mxu0 0
    %1785 = vmatpush1.bf16.msra.mxu0 %v1587
    %1786 = vmatprep.subr.bf16.mxu0 0
    %1787 = vmatpush1.bf16.msra.mxu0 %v1584
    %1788 = vmatprep.subr.bf16.mxu0 0
    %1789 = vmatpush1.bf16.msra.mxu0 %v1581
    %1790 = vmatprep.subr.bf16.mxu0 0
    %1791 = vmatpush1.bf16.msra.mxu0 %v1578
    %1792 = vmatprep.subr.bf16.mxu0 0
    %1793 = vmatpush1.bf16.msra.mxu0 %v1575
    %1794 = vmatprep.subr.bf16.mxu0 0
    %1795 = vmatpush1.bf16.msra.mxu0 %v1572
    %1796 = vmatprep.subr.bf16.mxu0 0
    %1797 = vmatpush2.bf16.msra.mxu0 0
    %1798 = vmatprep.subr.bf16.mxu0 0
    %1799 = vmatpush2.bf16.msra.mxu0 0
    %1800 = vmatprep.subr.bf16.mxu0 0
    %1801 = vmatpush2.bf16.msra.mxu0 0
    %1802 = vmatprep.subr.bf16.mxu0 0
    %1803 = vmatpush2.bf16.msra.mxu0 0
    %1804 = vmatprep.subr.bf16.mxu0 0
    %1805 = vmatpush2.bf16.msra.mxu0 0
    %1806 = vmatprep.subr.bf16.mxu0 0
    %1807 = vmatpush2.bf16.msra.mxu0 0
    %1808 = vmatprep.subr.bf16.mxu0 0
    %1809 = vmatpush2.bf16.msra.mxu0 0
    %1810 = vmatprep.subr.bf16.mxu0 0
    %1811 = vmatpush2.bf16.msra.mxu0 0
    %1812 = vmatprep.mubr.bf16.mxu0 0
    %1813 = vmatmul.mubr.bf16.gmra.mxu0 %v1738
    %v1814 = vpop.f32.mrf.mxu0
    %v1815 = vadd.f32 %v1630, %v1814
    %v1816 = vpop.f32.mrf.mxu0
    %v1817 = vpop.f32.mrf.mxu0
    %v1818 = vpop.f32.mrf.mxu0
    %1819 = vdwg.mxu0
    %v1821 = vrot.slane %v1774, 7
    %v1823 = vadd.f32 %v1324, %v1821
    %v1824 = vxor.u32 %v1823, 2147483648
    %v1825 = vmul.f32 %v1824, 1.442695
    %v1826 = vpow.pop %v1825
    %v1827 = vadd.f32 %v1826, 1.0
    %v1828 = vrcp.pop %v1827
    %v1829 = vmul.f32 1.0, %v1828
    %v1831 = vrot.slane %v1776, 7
    %v1833 = vadd.f32 %v1326, %v1831
    %v1834 = vxor.u32 %v1833, 2147483648
    %v1835 = vmul.f32 %v1834, 1.442695
    %v1836 = vpow.pop %v1835
    %v1837 = vadd.f32 %v1836, 1.0
    %v1838 = vrcp.pop %v1837
    %v1839 = vmul.f32 1.0, %v1838
    %v1841 = vrot.slane %v1815, 7
    %v1843 = vmul.f32 %v1829, %v1841
    %v1844 = vadd.f32 %v1485, %v1843
    %v1845 = vtanh.pop %v1844
    %v1846 = vsub.f32 1.0, %v1839
    %v1847 = vmul.f32 %v1846, %v1845
    %v1849 = vrot.slane %v1735, 7
    %v1851 = vmul.f32 %v1839, %v1849
    %v1852 = vadd.f32 %v1847, %v1851
    %v1853 = vmul.f32 %v90, %v1852
    %v1855 = vrot.slane %v1853, 1
    %v1857 = vadd.f32 %v1737, %v1855
    %v1858 = vpack.c.bf16 %v1852, %v1852
    %v1860 = vshrl.u32 %v1858, 16
    %1863 = vmatprep.subr.bf16.mxu0 %v1592
    %1864 = vmatpush1.bf16.msra.mxu0 %v1591
    %1865 = vmatprep.subr.bf16.mxu0 %v1589
    %1866 = vmatpush1.bf16.msra.mxu0 %v1588
    %1867 = vmatprep.subr.bf16.mxu0 %v1586
    %1868 = vmatpush1.bf16.msra.mxu0 %v1585
    %1869 = vmatprep.subr.bf16.mxu0 %v1583
    %1870 = vmatpush1.bf16.msra.mxu0 %v1582
    %1871 = vmatprep.subr.bf16.mxu0 %v1580
    %1872 = vmatpush1.bf16.msra.mxu0 %v1579
    %1873 = vmatprep.subr.bf16.mxu0 %v1577
    %1874 = vmatpush1.bf16.msra.mxu0 %v1576
    %1875 = vmatprep.subr.bf16.mxu0 %v1574
    %1876 = vmatpush1.bf16.msra.mxu0 %v1573
    %1877 = vmatprep.subr.bf16.mxu0 %v1571
    %1878 = vmatpush1.bf16.msra.mxu0 %v1570
    %1879 = vmatprep.subr.bf16.mxu0 0
    %1880 = vmatpush2.bf16.msra.mxu0 0
    %1881 = vmatprep.subr.bf16.mxu0 0
    %1882 = vmatpush2.bf16.msra.mxu0 0
    %1883 = vmatprep.subr.bf16.mxu0 0
    %1884 = vmatpush2.bf16.msra.mxu0 0
    %1885 = vmatprep.subr.bf16.mxu0 0
    %1886 = vmatpush2.bf16.msra.mxu0 0
    %1887 = vmatprep.subr.bf16.mxu0 0
    %1888 = vmatpush2.bf16.msra.mxu0 0
    %1889 = vmatprep.subr.bf16.mxu0 0
    %1890 = vmatpush2.bf16.msra.mxu0 0
    %1891 = vmatprep.subr.bf16.mxu0 0
    %1892 = vmatpush2.bf16.msra.mxu0 0
    %1893 = vmatprep.subr.bf16.mxu0 0
    %1894 = vmatpush2.bf16.msra.mxu0 0
    %1895 = vmatprep.mubr.bf16.mxu0 0
    %1896 = vmatmul.mubr.bf16.gmra.mxu0 %v1860
    %v1897 = vpop.f32.mrf.mxu0
    %v1898 = vadd.f32 %v1622, %v1897
    %v1899 = vpop.f32.mrf.mxu0
    %v1900 = vadd.f32 %v1626, %v1899
    %v1901 = vpop.f32.mrf.mxu0
    %v1902 = vpop.f32.mrf.mxu0
    %1903 = vdwg.mxu0
    %1904 = vmatprep.subr.bf16.mxu0 0
    %1905 = vmatpush1.bf16.msra.mxu0 %v1593
    %1906 = vmatprep.subr.bf16.mxu0 0
    %1907 = vmatpush1.bf16.msra.mxu0 %v1590
    %1908 = vmatprep.subr.bf16.mxu0 0
    %1909 = vmatpush1.bf16.msra.mxu0 %v1587
    %1910 = vmatprep.subr.bf16.mxu0 0
    %1911 = vmatpush1.bf16.msra.mxu0 %v1584
    %1912 = vmatprep.subr.bf16.mxu0 0
    %1913 = vmatpush1.bf16.msra.mxu0 %v1581
    %1914 = vmatprep.subr.bf16.mxu0 0
    %1915 = vmatpush1.bf16.msra.mxu0 %v1578
    %1916 = vmatprep.subr.bf16.mxu0 0
    %1917 = vmatpush1.bf16.msra.mxu0 %v1575
    %1918 = vmatprep.subr.bf16.mxu0 0
    %1919 = vmatpush1.bf16.msra.mxu0 %v1572
    %1920 = vmatprep.subr.bf16.mxu0 0
    %1921 = vmatpush2.bf16.msra.mxu0 0
    %1922 = vmatprep.subr.bf16.mxu0 0
    %1923 = vmatpush2.bf16.msra.mxu0 0
    %1924 = vmatprep.subr.bf16.mxu0 0
    %1925 = vmatpush2.bf16.msra.mxu0 0
    %1926 = vmatprep.subr.bf16.mxu0 0
    %1927 = vmatpush2.bf16.msra.mxu0 0
    %1928 = vmatprep.subr.bf16.mxu0 0
    %1929 = vmatpush2.bf16.msra.mxu0 0
    %1930 = vmatprep.subr.bf16.mxu0 0
    %1931 = vmatpush2.bf16.msra.mxu0 0
    %1932 = vmatprep.subr.bf16.mxu0 0
    %1933 = vmatpush2.bf16.msra.mxu0 0
    %1934 = vmatprep.subr.bf16.mxu0 0
    %1935 = vmatpush2.bf16.msra.mxu0 0
    %1936 = vmatprep.mubr.bf16.mxu0 0
    %1937 = vmatmul.mubr.bf16.gmra.mxu0 %v1860
    %v1938 = vpop.f32.mrf.mxu0
    %v1939 = vadd.f32 %v1630, %v1938
    %v1940 = vpop.f32.mrf.mxu0
    %v1941 = vpop.f32.mrf.mxu0
    %v1942 = vpop.f32.mrf.mxu0
    %1943 = vdwg.mxu0
    %v1945 = vrot.slane %v1898, 6
    %v1947 = vadd.f32 %v1324, %v1945
    %v1948 = vxor.u32 %v1947, 2147483648
    %v1949 = vmul.f32 %v1948, 1.442695
    %v1950 = vpow.pop %v1949
    %v1951 = vadd.f32 %v1950, 1.0
    %v1952 = vrcp.pop %v1951
    %v1953 = vmul.f32 1.0, %v1952
    %v1955 = vrot.slane %v1900, 6
    %v1957 = vadd.f32 %v1326, %v1955
    %v1958 = vxor.u32 %v1957, 2147483648
    %v1959 = vmul.f32 %v1958, 1.442695
    %v1960 = vpow.pop %v1959
    %v1961 = vadd.f32 %v1960, 1.0
    %v1962 = vrcp.pop %v1961
    %v1963 = vmul.f32 1.0, %v1962
    %v1965 = vrot.slane %v1939, 6
    %v1967 = vmul.f32 %v1953, %v1965
    %v1968 = vadd.f32 %v1485, %v1967
    %v1969 = vtanh.pop %v1968
    %v1970 = vsub.f32 1.0, %v1963
    %v1971 = vmul.f32 %v1970, %v1969
    %v1973 = vrot.slane %v1852, 7
    %v1975 = vmul.f32 %v1963, %v1973
    %v1976 = vadd.f32 %v1971, %v1975
    %v1977 = vmul.f32 %v90, %v1976
    %v1979 = vrot.slane %v1977, 2
    %v1981 = vadd.f32 %v1857, %v1979
    %v1982 = vpack.c.bf16 %v1976, %v1976
    %v1984 = vrot.slane %v1982, 1
    %1986 = vmatprep.subr.bf16.mxu0 %v1592
    %1987 = vmatpush1.bf16.msra.mxu0 %v1591
    %1988 = vmatprep.subr.bf16.mxu0 %v1589
    %1989 = vmatpush1.bf16.msra.mxu0 %v1588
    %1990 = vmatprep.subr.bf16.mxu0 %v1586
    %1991 = vmatpush1.bf16.msra.mxu0 %v1585
    %1992 = vmatprep.subr.bf16.mxu0 %v1583
    %1993 = vmatpush1.bf16.msra.mxu0 %v1582
    %1994 = vmatprep.subr.bf16.mxu0 %v1580
    %1995 = vmatpush1.bf16.msra.mxu0 %v1579
    %1996 = vmatprep.subr.bf16.mxu0 %v1577
    %1997 = vmatpush1.bf16.msra.mxu0 %v1576
    %1998 = vmatprep.subr.bf16.mxu0 %v1574
    %1999 = vmatpush1.bf16.msra.mxu0 %v1573
    %2000 = vmatprep.subr.bf16.mxu0 %v1571
    %2001 = vmatpush1.bf16.msra.mxu0 %v1570
    %2002 = vmatprep.subr.bf16.mxu0 0
    %2003 = vmatpush2.bf16.msra.mxu0 0
    %2004 = vmatprep.subr.bf16.mxu0 0
    %2005 = vmatpush2.bf16.msra.mxu0 0
    %2006 = vmatprep.subr.bf16.mxu0 0
    %2007 = vmatpush2.bf16.msra.mxu0 0
    %2008 = vmatprep.subr.bf16.mxu0 0
    %2009 = vmatpush2.bf16.msra.mxu0 0
    %2010 = vmatprep.subr.bf16.mxu0 0
    %2011 = vmatpush2.bf16.msra.mxu0 0
    %2012 = vmatprep.subr.bf16.mxu0 0
    %2013 = vmatpush2.bf16.msra.mxu0 0
    %2014 = vmatprep.subr.bf16.mxu0 0
    %2015 = vmatpush2.bf16.msra.mxu0 0
    %2016 = vmatprep.subr.bf16.mxu0 0
    %2017 = vmatpush2.bf16.msra.mxu0 0
    %2018 = vmatprep.mubr.bf16.mxu0 0
    %2019 = vmatmul.mubr.bf16.gmra.mxu0 %v1984
    %v2020 = vpop.f32.mrf.mxu0
    %v2021 = vadd.f32 %v1622, %v2020
    %v2022 = vpop.f32.mrf.mxu0
    %v2023 = vadd.f32 %v1626, %v2022
    %v2024 = vpop.f32.mrf.mxu0
    %v2025 = vpop.f32.mrf.mxu0
    %2026 = vdwg.mxu0
    %2027 = vmatprep.subr.bf16.mxu0 0
    %2028 = vmatpush1.bf16.msra.mxu0 %v1593
    %2029 = vmatprep.subr.bf16.mxu0 0
    %2030 = vmatpush1.bf16.msra.mxu0 %v1590
    %2031 = vmatprep.subr.bf16.mxu0 0
    %2032 = vmatpush1.bf16.msra.mxu0 %v1587
    %2033 = vmatprep.subr.bf16.mxu0 0
    %2034 = vmatpush1.bf16.msra.mxu0 %v1584
    %2035 = vmatprep.subr.bf16.mxu0 0
    %2036 = vmatpush1.bf16.msra.mxu0 %v1581
    %2037 = vmatprep.subr.bf16.mxu0 0
    %2038 = vmatpush1.bf16.msra.mxu0 %v1578
    %2039 = vmatprep.subr.bf16.mxu0 0
    %2040 = vmatpush1.bf16.msra.mxu0 %v1575
    %2041 = vmatprep.subr.bf16.mxu0 0
    %2042 = vmatpush1.bf16.msra.mxu0 %v1572
    %2043 = vmatprep.subr.bf16.mxu0 0
    %2044 = vmatpush2.bf16.msra.mxu0 0
    %2045 = vmatprep.subr.bf16.mxu0 0
    %2046 = vmatpush2.bf16.msra.mxu0 0
    %2047 = vmatprep.subr.bf16.mxu0 0
    %2048 = vmatpush2.bf16.msra.mxu0 0
    %2049 = vmatprep.subr.bf16.mxu0 0
    %2050 = vmatpush2.bf16.msra.mxu0 0
    %2051 = vmatprep.subr.bf16.mxu0 0
    %2052 = vmatpush2.bf16.msra.mxu0 0
    %2053 = vmatprep.subr.bf16.mxu0 0
    %2054 = vmatpush2.bf16.msra.mxu0 0
    %2055 = vmatprep.subr.bf16.mxu0 0
    %2056 = vmatpush2.bf16.msra.mxu0 0
    %2057 = vmatprep.subr.bf16.mxu0 0
    %2058 = vmatpush2.bf16.msra.mxu0 0
    %2059 = vmatprep.mubr.bf16.mxu0 0
    %2060 = vmatmul.mubr.bf16.gmra.mxu0 %v1984
    %v2061 = vpop.f32.mrf.mxu0
    %v2062 = vadd.f32 %v1630, %v2061
    %v2063 = vpop.f32.mrf.mxu0
    %v2064 = vpop.f32.mrf.mxu0
    %v2065 = vpop.f32.mrf.mxu0
    %2066 = vdwg.mxu0
    %v2068 = vrot.slane %v2021, 5
    %v2070 = vadd.f32 %v1324, %v2068
    %v2071 = vxor.u32 %v2070, 2147483648
    %v2072 = vmul.f32 %v2071, 1.442695
    %v2073 = vpow.pop %v2072
    %v2074 = vadd.f32 %v2073, 1.0
    %v2075 = vrcp.pop %v2074
    %v2076 = vmul.f32 1.0, %v2075
    %v2078 = vrot.slane %v2023, 5
    %v2080 = vadd.f32 %v1326, %v2078
    %v2081 = vxor.u32 %v2080, 2147483648
    %v2082 = vmul.f32 %v2081, 1.442695
    %v2083 = vpow.pop %v2082
    %v2084 = vadd.f32 %v2083, 1.0
    %v2085 = vrcp.pop %v2084
    %v2086 = vmul.f32 1.0, %v2085
    %v2088 = vrot.slane %v2062, 5
    %v2090 = vmul.f32 %v2076, %v2088
    %v2091 = vadd.f32 %v1485, %v2090
    %v2092 = vtanh.pop %v2091
    %v2093 = vsub.f32 1.0, %v2086
    %v2094 = vmul.f32 %v2093, %v2092
    %v2096 = vrot.slane %v1976, 7
    %v2098 = vmul.f32 %v2086, %v2096
    %v2099 = vadd.f32 %v2094, %v2098
    %v2100 = vmul.f32 %v90, %v2099
    %v2102 = vrot.slane %v2100, 3
    %v2104 = vadd.f32 %v1981, %v2102
    %v2105 = vpack.c.bf16 %v2099, %v2099
    %v2107 = vshrl.u32 %v2105, 16
    %v2109 = vrot.slane %v2107, 1
    %2111 = vmatprep.subr.bf16.mxu0 %v1592
    %2112 = vmatpush1.bf16.msra.mxu0 %v1591
    %2113 = vmatprep.subr.bf16.mxu0 %v1589
    %2114 = vmatpush1.bf16.msra.mxu0 %v1588
    %2115 = vmatprep.subr.bf16.mxu0 %v1586
    %2116 = vmatpush1.bf16.msra.mxu0 %v1585
    %2117 = vmatprep.subr.bf16.mxu0 %v1583
    %2118 = vmatpush1.bf16.msra.mxu0 %v1582
    %2119 = vmatprep.subr.bf16.mxu0 %v1580
    %2120 = vmatpush1.bf16.msra.mxu0 %v1579
    %2121 = vmatprep.subr.bf16.mxu0 %v1577
    %2122 = vmatpush1.bf16.msra.mxu0 %v1576
    %2123 = vmatprep.subr.bf16.mxu0 %v1574
    %2124 = vmatpush1.bf16.msra.mxu0 %v1573
    %2125 = vmatprep.subr.bf16.mxu0 %v1571
    %2126 = vmatpush1.bf16.msra.mxu0 %v1570
    %2127 = vmatprep.subr.bf16.mxu0 0
    %2128 = vmatpush2.bf16.msra.mxu0 0
    %2129 = vmatprep.subr.bf16.mxu0 0
    %2130 = vmatpush2.bf16.msra.mxu0 0
    %2131 = vmatprep.subr.bf16.mxu0 0
    %2132 = vmatpush2.bf16.msra.mxu0 0
    %2133 = vmatprep.subr.bf16.mxu0 0
    %2134 = vmatpush2.bf16.msra.mxu0 0
    %2135 = vmatprep.subr.bf16.mxu0 0
    %2136 = vmatpush2.bf16.msra.mxu0 0
    %2137 = vmatprep.subr.bf16.mxu0 0
    %2138 = vmatpush2.bf16.msra.mxu0 0
    %2139 = vmatprep.subr.bf16.mxu0 0
    %2140 = vmatpush2.bf16.msra.mxu0 0
    %2141 = vmatprep.subr.bf16.mxu0 0
    %2142 = vmatpush2.bf16.msra.mxu0 0
    %2143 = vmatprep.mubr.bf16.mxu0 0
    %2144 = vmatmul.mubr.bf16.gmra.mxu0 %v2109
    %v2145 = vpop.f32.mrf.mxu0
    %v2146 = vadd.f32 %v1622, %v2145
    %v2147 = vpop.f32.mrf.mxu0
    %v2148 = vadd.f32 %v1626, %v2147
    %v2149 = vpop.f32.mrf.mxu0
    %v2150 = vpop.f32.mrf.mxu0
    %2151 = vdwg.mxu0
    %2152 = vmatprep.subr.bf16.mxu0 0
    %2153 = vmatpush1.bf16.msra.mxu0 %v1593
    %2154 = vmatprep.subr.bf16.mxu0 0
    %2155 = vmatpush1.bf16.msra.mxu0 %v1590
    %2156 = vmatprep.subr.bf16.mxu0 0
    %2157 = vmatpush1.bf16.msra.mxu0 %v1587
    %2158 = vmatprep.subr.bf16.mxu0 0
    %2159 = vmatpush1.bf16.msra.mxu0 %v1584
    %2160 = vmatprep.subr.bf16.mxu0 0
    %2161 = vmatpush1.bf16.msra.mxu0 %v1581
    %2162 = vmatprep.subr.bf16.mxu0 0
    %2163 = vmatpush1.bf16.msra.mxu0 %v1578
    %2164 = vmatprep.subr.bf16.mxu0 0
    %2165 = vmatpush1.bf16.msra.mxu0 %v1575
    %2166 = vmatprep.subr.bf16.mxu0 0
    %2167 = vmatpush1.bf16.msra.mxu0 %v1572
    %2168 = vmatprep.subr.bf16.mxu0 0
    %2169 = vmatpush2.bf16.msra.mxu0 0
    %2170 = vmatprep.subr.bf16.mxu0 0
    %2171 = vmatpush2.bf16.msra.mxu0 0
    %2172 = vmatprep.subr.bf16.mxu0 0
    %2173 = vmatpush2.bf16.msra.mxu0 0
    %2174 = vmatprep.subr.bf16.mxu0 0
    %2175 = vmatpush2.bf16.msra.mxu0 0
    %2176 = vmatprep.subr.bf16.mxu0 0
    %2177 = vmatpush2.bf16.msra.mxu0 0
    %2178 = vmatprep.subr.bf16.mxu0 0
    %2179 = vmatpush2.bf16.msra.mxu0 0
    %2180 = vmatprep.subr.bf16.mxu0 0
    %2181 = vmatpush2.bf16.msra.mxu0 0
    %2182 = vmatprep.subr.bf16.mxu0 0
    %2183 = vmatpush2.bf16.msra.mxu0 0
    %2184 = vmatprep.mubr.bf16.mxu0 0
    %2185 = vmatmul.mubr.bf16.gmra.mxu0 %v2109
    %v2186 = vpop.f32.mrf.mxu0
    %v2187 = vadd.f32 %v1630, %v2186
    %v2188 = vpop.f32.mrf.mxu0
    %v2189 = vpop.f32.mrf.mxu0
    %v2190 = vpop.f32.mrf.mxu0
    %2191 = vdwg.mxu0
    %v2193 = vrot.slane %v2146, 4
    %v2195 = vadd.f32 %v1324, %v2193
    %v2196 = vxor.u32 %v2195, 2147483648
    %v2197 = vmul.f32 %v2196, 1.442695
    %v2198 = vpow.pop %v2197
    %v2199 = vadd.f32 %v2198, 1.0
    %v2200 = vrcp.pop %v2199
    %v2201 = vmul.f32 1.0, %v2200
    %v2203 = vrot.slane %v2148, 4
    %v2205 = vadd.f32 %v1326, %v2203
    %v2206 = vxor.u32 %v2205, 2147483648
    %v2207 = vmul.f32 %v2206, 1.442695
    %v2208 = vpow.pop %v2207
    %v2209 = vadd.f32 %v2208, 1.0
    %v2210 = vrcp.pop %v2209
    %v2211 = vmul.f32 1.0, %v2210
    %v2213 = vrot.slane %v2187, 4
    %v2215 = vmul.f32 %v2201, %v2213
    %v2216 = vadd.f32 %v1485, %v2215
    %v2217 = vtanh.pop %v2216
    %v2218 = vsub.f32 1.0, %v2211
    %v2219 = vmul.f32 %v2218, %v2217
    %v2221 = vrot.slane %v2099, 7
    %v2223 = vmul.f32 %v2211, %v2221
    %v2224 = vadd.f32 %v2219, %v2223
    %v2225 = vmul.f32 %v90, %v2224
    %v2227 = vrot.slane %v2225, 4
    %v2229 = vadd.f32 %v2104, %v2227
    %v2230 = vpack.c.bf16 %v2224, %v2224
    %v2232 = vrot.slane %v2230, 2
    %2234 = vmatprep.subr.bf16.mxu0 %v1592
    %2235 = vmatpush1.bf16.msra.mxu0 %v1591
    %2236 = vmatprep.subr.bf16.mxu0 %v1589
    %2237 = vmatpush1.bf16.msra.mxu0 %v1588
    %2238 = vmatprep.subr.bf16.mxu0 %v1586
    %2239 = vmatpush1.bf16.msra.mxu0 %v1585
    %2240 = vmatprep.subr.bf16.mxu0 %v1583
    %2241 = vmatpush1.bf16.msra.mxu0 %v1582
    %2242 = vmatprep.subr.bf16.mxu0 %v1580
    %2243 = vmatpush1.bf16.msra.mxu0 %v1579
    %2244 = vmatprep.subr.bf16.mxu0 %v1577
    %2245 = vmatpush1.bf16.msra.mxu0 %v1576
    %2246 = vmatprep.subr.bf16.mxu0 %v1574
    %2247 = vmatpush1.bf16.msra.mxu0 %v1573
    %2248 = vmatprep.subr.bf16.mxu0 %v1571
    %2249 = vmatpush1.bf16.msra.mxu0 %v1570
    %2250 = vmatprep.subr.bf16.mxu0 0
    %2251 = vmatpush2.bf16.msra.mxu0 0
    %2252 = vmatprep.subr.bf16.mxu0 0
    %2253 = vmatpush2.bf16.msra.mxu0 0
    %2254 = vmatprep.subr.bf16.mxu0 0
    %2255 = vmatpush2.bf16.msra.mxu0 0
    %2256 = vmatprep.subr.bf16.mxu0 0
    %2257 = vmatpush2.bf16.msra.mxu0 0
    %2258 = vmatprep.subr.bf16.mxu0 0
    %2259 = vmatpush2.bf16.msra.mxu0 0
    %2260 = vmatprep.subr.bf16.mxu0 0
    %2261 = vmatpush2.bf16.msra.mxu0 0
    %2262 = vmatprep.subr.bf16.mxu0 0
    %2263 = vmatpush2.bf16.msra.mxu0 0
    %2264 = vmatprep.subr.bf16.mxu0 0
    %2265 = vmatpush2.bf16.msra.mxu0 0
    %2266 = vmatprep.mubr.bf16.mxu0 0
    %2267 = vmatmul.mubr.bf16.gmra.mxu0 %v2232
    %v2268 = vpop.f32.mrf.mxu0
    %v2269 = vadd.f32 %v1622, %v2268
    %v2270 = vpop.f32.mrf.mxu0
    %v2271 = vadd.f32 %v1626, %v2270
    %v2272 = vpop.f32.mrf.mxu0
    %v2273 = vpop.f32.mrf.mxu0
    %2274 = vdwg.mxu0
    %2275 = vmatprep.subr.bf16.mxu0 0
    %2276 = vmatpush1.bf16.msra.mxu0 %v1593
    %2277 = vmatprep.subr.bf16.mxu0 0
    %2278 = vmatpush1.bf16.msra.mxu0 %v1590
    %2279 = vmatprep.subr.bf16.mxu0 0
    %2280 = vmatpush1.bf16.msra.mxu0 %v1587
    %2281 = vmatprep.subr.bf16.mxu0 0
    %2282 = vmatpush1.bf16.msra.mxu0 %v1584
    %2283 = vmatprep.subr.bf16.mxu0 0
    %2284 = vmatpush1.bf16.msra.mxu0 %v1581
    %2285 = vmatprep.subr.bf16.mxu0 0
    %2286 = vmatpush1.bf16.msra.mxu0 %v1578
    %2287 = vmatprep.subr.bf16.mxu0 0
    %2288 = vmatpush1.bf16.msra.mxu0 %v1575
    %2289 = vmatprep.subr.bf16.mxu0 0
    %2290 = vmatpush1.bf16.msra.mxu0 %v1572
    %2291 = vmatprep.subr.bf16.mxu0 0
    %2292 = vmatpush2.bf16.msra.mxu0 0
    %2293 = vmatprep.subr.bf16.mxu0 0
    %2294 = vmatpush2.bf16.msra.mxu0 0
    %2295 = vmatprep.subr.bf16.mxu0 0
    %2296 = vmatpush2.bf16.msra.mxu0 0
    %2297 = vmatprep.subr.bf16.mxu0 0
    %2298 = vmatpush2.bf16.msra.mxu0 0
    %2299 = vmatprep.subr.bf16.mxu0 0
    %2300 = vmatpush2.bf16.msra.mxu0 0
    %2301 = vmatprep.subr.bf16.mxu0 0
    %2302 = vmatpush2.bf16.msra.mxu0 0
    %2303 = vmatprep.subr.bf16.mxu0 0
    %2304 = vmatpush2.bf16.msra.mxu0 0
    %2305 = vmatprep.subr.bf16.mxu0 0
    %2306 = vmatpush2.bf16.msra.mxu0 0
    %2307 = vmatprep.mubr.bf16.mxu0 0
    %2308 = vmatmul.mubr.bf16.gmra.mxu0 %v2232
    %v2309 = vpop.f32.mrf.mxu0
    %v2310 = vadd.f32 %v1630, %v2309
    %v2311 = vpop.f32.mrf.mxu0
    %v2312 = vpop.f32.mrf.mxu0
    %v2313 = vpop.f32.mrf.mxu0
    %2314 = vdwg.mxu0
    %v2316 = vrot.slane %v2269, 3
    %v2318 = vadd.f32 %v1324, %v2316
    %v2319 = vxor.u32 %v2318, 2147483648
    %v2320 = vmul.f32 %v2319, 1.442695
    %v2321 = vpow.pop %v2320
    %v2322 = vadd.f32 %v2321, 1.0
    %v2323 = vrcp.pop %v2322
    %v2324 = vmul.f32 1.0, %v2323
    %v2326 = vrot.slane %v2271, 3
    %v2328 = vadd.f32 %v1326, %v2326
    %v2329 = vxor.u32 %v2328, 2147483648
    %v2330 = vmul.f32 %v2329, 1.442695
    %v2331 = vpow.pop %v2330
    %v2332 = vadd.f32 %v2331, 1.0
    %v2333 = vrcp.pop %v2332
    %v2334 = vmul.f32 1.0, %v2333
    %v2336 = vrot.slane %v2310, 3
    %v2338 = vmul.f32 %v2324, %v2336
    %v2339 = vadd.f32 %v1485, %v2338
    %v2340 = vtanh.pop %v2339
    %v2341 = vsub.f32 1.0, %v2334
    %v2342 = vmul.f32 %v2341, %v2340
    %v2344 = vrot.slane %v2224, 7
    %v2346 = vmul.f32 %v2334, %v2344
    %v2347 = vadd.f32 %v2342, %v2346
    %v2348 = vmul.f32 %v90, %v2347
    %v2350 = vrot.slane %v2348, 5
    %v2352 = vadd.f32 %v2229, %v2350
    %v2353 = vpack.c.bf16 %v2347, %v2347
    %v2355 = vshrl.u32 %v2353, 16
    %v2357 = vrot.slane %v2355, 2
    %2359 = vmatprep.subr.bf16.mxu0 %v1592
    %2360 = vmatpush1.bf16.msra.mxu0 %v1591
    %2361 = vmatprep.subr.bf16.mxu0 %v1589
    %2362 = vmatpush1.bf16.msra.mxu0 %v1588
    %2363 = vmatprep.subr.bf16.mxu0 %v1586
    %2364 = vmatpush1.bf16.msra.mxu0 %v1585
    %2365 = vmatprep.subr.bf16.mxu0 %v1583
    %2366 = vmatpush1.bf16.msra.mxu0 %v1582
    %2367 = vmatprep.subr.bf16.mxu0 %v1580
    %2368 = vmatpush1.bf16.msra.mxu0 %v1579
    %2369 = vmatprep.subr.bf16.mxu0 %v1577
    %2370 = vmatpush1.bf16.msra.mxu0 %v1576
    %2371 = vmatprep.subr.bf16.mxu0 %v1574
    %2372 = vmatpush1.bf16.msra.mxu0 %v1573
    %2373 = vmatprep.subr.bf16.mxu0 %v1571
    %2374 = vmatpush1.bf16.msra.mxu0 %v1570
    %2375 = vmatprep.subr.bf16.mxu0 0
    %2376 = vmatpush2.bf16.msra.mxu0 0
    %2377 = vmatprep.subr.bf16.mxu0 0
    %2378 = vmatpush2.bf16.msra.mxu0 0
    %2379 = vmatprep.subr.bf16.mxu0 0
    %2380 = vmatpush2.bf16.msra.mxu0 0
    %2381 = vmatprep.subr.bf16.mxu0 0
    %2382 = vmatpush2.bf16.msra.mxu0 0
    %2383 = vmatprep.subr.bf16.mxu0 0
    %2384 = vmatpush2.bf16.msra.mxu0 0
    %2385 = vmatprep.subr.bf16.mxu0 0
    %2386 = vmatpush2.bf16.msra.mxu0 0
    %2387 = vmatprep.subr.bf16.mxu0 0
    %2388 = vmatpush2.bf16.msra.mxu0 0
    %2389 = vmatprep.subr.bf16.mxu0 0
    %2390 = vmatpush2.bf16.msra.mxu0 0
    %2391 = vmatprep.mubr.bf16.mxu0 0
    %2392 = vmatmul.mubr.bf16.gmra.mxu0 %v2357
    %v2393 = vpop.f32.mrf.mxu0
    %v2394 = vadd.f32 %v1622, %v2393
    %v2395 = vpop.f32.mrf.mxu0
    %v2396 = vadd.f32 %v1626, %v2395
    %v2397 = vpop.f32.mrf.mxu0
    %v2398 = vpop.f32.mrf.mxu0
    %2399 = vdwg.mxu0
    %2400 = vmatprep.subr.bf16.mxu0 0
    %2401 = vmatpush1.bf16.msra.mxu0 %v1593
    %2402 = vmatprep.subr.bf16.mxu0 0
    %2403 = vmatpush1.bf16.msra.mxu0 %v1590
    %2404 = vmatprep.subr.bf16.mxu0 0
    %2405 = vmatpush1.bf16.msra.mxu0 %v1587
    %2406 = vmatprep.subr.bf16.mxu0 0
    %2407 = vmatpush1.bf16.msra.mxu0 %v1584
    %2408 = vmatprep.subr.bf16.mxu0 0
    %2409 = vmatpush1.bf16.msra.mxu0 %v1581
    %2410 = vmatprep.subr.bf16.mxu0 0
    %2411 = vmatpush1.bf16.msra.mxu0 %v1578
    %2412 = vmatprep.subr.bf16.mxu0 0
    %2413 = vmatpush1.bf16.msra.mxu0 %v1575
    %2414 = vmatprep.subr.bf16.mxu0 0
    %2415 = vmatpush1.bf16.msra.mxu0 %v1572
    %2416 = vmatprep.subr.bf16.mxu0 0
    %2417 = vmatpush2.bf16.msra.mxu0 0
    %2418 = vmatprep.subr.bf16.mxu0 0
    %2419 = vmatpush2.bf16.msra.mxu0 0
    %2420 = vmatprep.subr.bf16.mxu0 0
    %2421 = vmatpush2.bf16.msra.mxu0 0
    %2422 = vmatprep.subr.bf16.mxu0 0
    %2423 = vmatpush2.bf16.msra.mxu0 0
    %2424 = vmatprep.subr.bf16.mxu0 0
    %2425 = vmatpush2.bf16.msra.mxu0 0
    %2426 = vmatprep.subr.bf16.mxu0 0
    %2427 = vmatpush2.bf16.msra.mxu0 0
    %2428 = vmatprep.subr.bf16.mxu0 0
    %2429 = vmatpush2.bf16.msra.mxu0 0
    %2430 = vmatprep.subr.bf16.mxu0 0
    %2431 = vmatpush2.bf16.msra.mxu0 0
    %2432 = vmatprep.mubr.bf16.mxu0 0
    %2433 = vmatmul.mubr.bf16.gmra.mxu0 %v2357
    %v2434 = vpop.f32.mrf.mxu0
    %v2435 = vadd.f32 %v1630, %v2434
    %v2436 = vpop.f32.mrf.mxu0
    %v2437 = vpop.f32.mrf.mxu0
    %v2438 = vpop.f32.mrf.mxu0
    %2439 = vdwg.mxu0
    %v2441 = vrot.slane %v2394, 2
    %v2443 = vadd.f32 %v1324, %v2441
    %v2444 = vxor.u32 %v2443, 2147483648
    %v2445 = vmul.f32 %v2444, 1.442695
    %v2446 = vpow.pop %v2445
    %v2447 = vadd.f32 %v2446, 1.0
    %v2448 = vrcp.pop %v2447
    %v2449 = vmul.f32 1.0, %v2448
    %v2451 = vrot.slane %v2396, 2
    %v2453 = vadd.f32 %v1326, %v2451
    %v2454 = vxor.u32 %v2453, 2147483648
    %v2455 = vmul.f32 %v2454, 1.442695
    %v2456 = vpow.pop %v2455
    %v2457 = vadd.f32 %v2456, 1.0
    %v2458 = vrcp.pop %v2457
    %v2459 = vmul.f32 1.0, %v2458
    %v2461 = vrot.slane %v2435, 2
    %v2463 = vmul.f32 %v2449, %v2461
    %v2464 = vadd.f32 %v1485, %v2463
    %v2465 = vtanh.pop %v2464
    %v2466 = vsub.f32 1.0, %v2459
    %v2467 = vmul.f32 %v2466, %v2465
    %v2469 = vrot.slane %v2347, 7
    %v2471 = vmul.f32 %v2459, %v2469
    %v2472 = vadd.f32 %v2467, %v2471
    %v2473 = vmul.f32 %v90, %v2472
    %v2475 = vrot.slane %v2473, 6
    %v2477 = vadd.f32 %v2352, %v2475
    %v2478 = vpack.c.bf16 %v2472, %v2472
    %v2480 = vrot.slane %v2478, 3
    %2482 = vmatprep.subr.bf16.mxu0 %v1592
    %2483 = vmatpush1.bf16.msra.mxu0 %v1591
    %2484 = vmatprep.subr.bf16.mxu0 %v1589
    %2485 = vmatpush1.bf16.msra.mxu0 %v1588
    %2486 = vmatprep.subr.bf16.mxu0 %v1586
    %2487 = vmatpush1.bf16.msra.mxu0 %v1585
    %2488 = vmatprep.subr.bf16.mxu0 %v1583
    %2489 = vmatpush1.bf16.msra.mxu0 %v1582
    %2490 = vmatprep.subr.bf16.mxu0 %v1580
    %2491 = vmatpush1.bf16.msra.mxu0 %v1579
    %2492 = vmatprep.subr.bf16.mxu0 %v1577
    %2493 = vmatpush1.bf16.msra.mxu0 %v1576
    %2494 = vmatprep.subr.bf16.mxu0 %v1574
    %2495 = vmatpush1.bf16.msra.mxu0 %v1573
    %2496 = vmatprep.subr.bf16.mxu0 %v1571
    %2497 = vmatpush1.bf16.msra.mxu0 %v1570
    %2498 = vmatprep.subr.bf16.mxu0 0
    %2499 = vmatpush2.bf16.msra.mxu0 0
    %2500 = vmatprep.subr.bf16.mxu0 0
    %2501 = vmatpush2.bf16.msra.mxu0 0
    %2502 = vmatprep.subr.bf16.mxu0 0
    %2503 = vmatpush2.bf16.msra.mxu0 0
    %2504 = vmatprep.subr.bf16.mxu0 0
    %2505 = vmatpush2.bf16.msra.mxu0 0
    %2506 = vmatprep.subr.bf16.mxu0 0
    %2507 = vmatpush2.bf16.msra.mxu0 0
    %2508 = vmatprep.subr.bf16.mxu0 0
    %2509 = vmatpush2.bf16.msra.mxu0 0
    %2510 = vmatprep.subr.bf16.mxu0 0
    %2511 = vmatpush2.bf16.msra.mxu0 0
    %2512 = vmatprep.subr.bf16.mxu0 0
    %2513 = vmatpush2.bf16.msra.mxu0 0
    %2514 = vmatprep.mubr.bf16.mxu0 0
    %2515 = vmatmul.mubr.bf16.gmra.mxu0 %v2480
    %v2516 = vpop.f32.mrf.mxu0
    %v2517 = vadd.f32 %v1622, %v2516
    %v2518 = vpop.f32.mrf.mxu0
    %v2519 = vadd.f32 %v1626, %v2518
    %v2520 = vpop.f32.mrf.mxu0
    %v2521 = vpop.f32.mrf.mxu0
    %2522 = vdwg.mxu0
    %2523 = vmatprep.subr.bf16.mxu0 0
    %2524 = vmatpush1.bf16.msra.mxu0 %v1593
    %2525 = vmatprep.subr.bf16.mxu0 0
    %2526 = vmatpush1.bf16.msra.mxu0 %v1590
    %2527 = vmatprep.subr.bf16.mxu0 0
    %2528 = vmatpush1.bf16.msra.mxu0 %v1587
    %2529 = vmatprep.subr.bf16.mxu0 0
    %2530 = vmatpush1.bf16.msra.mxu0 %v1584
    %2531 = vmatprep.subr.bf16.mxu0 0
    %2532 = vmatpush1.bf16.msra.mxu0 %v1581
    %2533 = vmatprep.subr.bf16.mxu0 0
    %2534 = vmatpush1.bf16.msra.mxu0 %v1578
    %2535 = vmatprep.subr.bf16.mxu0 0
    %2536 = vmatpush1.bf16.msra.mxu0 %v1575
    %2537 = vmatprep.subr.bf16.mxu0 0
    %2538 = vmatpush1.bf16.msra.mxu0 %v1572
    %2539 = vmatprep.subr.bf16.mxu0 0
    %2540 = vmatpush2.bf16.msra.mxu0 0
    %2541 = vmatprep.subr.bf16.mxu0 0
    %2542 = vmatpush2.bf16.msra.mxu0 0
    %2543 = vmatprep.subr.bf16.mxu0 0
    %2544 = vmatpush2.bf16.msra.mxu0 0
    %2545 = vmatprep.subr.bf16.mxu0 0
    %2546 = vmatpush2.bf16.msra.mxu0 0
    %2547 = vmatprep.subr.bf16.mxu0 0
    %2548 = vmatpush2.bf16.msra.mxu0 0
    %2549 = vmatprep.subr.bf16.mxu0 0
    %2550 = vmatpush2.bf16.msra.mxu0 0
    %2551 = vmatprep.subr.bf16.mxu0 0
    %2552 = vmatpush2.bf16.msra.mxu0 0
    %2553 = vmatprep.subr.bf16.mxu0 0
    %2554 = vmatpush2.bf16.msra.mxu0 0
    %2555 = vmatprep.mubr.bf16.mxu0 0
    %2556 = vmatmul.mubr.bf16.gmra.mxu0 %v2480
    %v2557 = vpop.f32.mrf.mxu0
    %v2558 = vadd.f32 %v1630, %v2557
    %v2559 = vpop.f32.mrf.mxu0
    %v2560 = vpop.f32.mrf.mxu0
    %v2561 = vpop.f32.mrf.mxu0
    %2562 = vdwg.mxu0
    %v2564 = vrot.slane %v2517, 1
    %v2566 = vadd.f32 %v1324, %v2564
    %v2567 = vxor.u32 %v2566, 2147483648
    %v2568 = vmul.f32 %v2567, 1.442695
    %v2569 = vpow.pop %v2568
    %v2570 = vadd.f32 %v2569, 1.0
    %v2571 = vrcp.pop %v2570
    %v2572 = vmul.f32 1.0, %v2571
    %v2574 = vrot.slane %v2519, 1
    %v2576 = vadd.f32 %v1326, %v2574
    %v2577 = vxor.u32 %v2576, 2147483648
    %v2578 = vmul.f32 %v2577, 1.442695
    %v2579 = vpow.pop %v2578
    %v2580 = vadd.f32 %v2579, 1.0
    %v2581 = vrcp.pop %v2580
    %v2582 = vmul.f32 1.0, %v2581
    %v2584 = vrot.slane %v2558, 1
    %v2586 = vmul.f32 %v2572, %v2584
    %v2587 = vadd.f32 %v1485, %v2586
    %v2588 = vtanh.pop %v2587
    %v2589 = vsub.f32 1.0, %v2582
    %v2590 = vmul.f32 %v2589, %v2588
    %v2592 = vrot.slane %v2472, 7
    %v2594 = vmul.f32 %v2582, %v2592
    %v2595 = vadd.f32 %v2590, %v2594
    %v2596 = vmul.f32 %v90, %v2595
    %v2598 = vrot.slane %v2596, 7
    %v2600 = vadd.f32 %v2477, %v2598
    %v2601 = vld [vmem:[%s5] sm:$0x1]
    %v2602 = vmul.f32 %v2600, %v2601
    %vm2603 = vcmask 1040384
    %v2604 = vsel %vm2603, %v2602, 0.0
    %2605 = vadd.xlane.f32.xlu0 %v2604
    %v2606 = vpop.xlane.xlu0 %2605
    %v2607 = vadd.f32 %v2606, %v91
    %v2608 = vxor.u32 %v2607, 2147483648
    %v2609 = vmul.f32 %v2608, 1.442695
    %v2610 = vpow.pop %v2609
    %v2611 = vadd.f32 %v2610, 1.0
    %v2612 = vrcp.pop %v2611
    %v2613 = vmul.f32 1.0, %v2612
    %v2616 = vunpack.c.l.s4 1966171168
    %v2617 = vunpack.c.0.s8 %v2616
    %v2618 = vlaneseq
    %v2619 = vshrl.u32 %v2618, 7
    %v2620 = vsub.s32 %v2617, %v2619
    %v2621 = vrot.slane %v2613, %v2620
    %v2623 = vunpack.c.l.s4 1966171168
    %v2624 = vunpack.c.0.s8 %v2623
    %v2625 = vlaneseq
    %v2626 = vshrl.u32 %v2625, 7
    %v2627 = vsub.s32 %v2624, %v2626
    %v2628 = vrot.slane %v2621, %v2627
    %2629 = vrot.lane.b32.xlu0 %v2628, 1
    %v2630 = vpop.permute.xlu0 %2629
    %v2632 = vsub.f32 %v91, %v2630
    %v2633 = vmul.f32 %v2632, %v2632
    %vm2634 = vcmask 0
    %2635 = vst.msk [vmem:[%s7] sm:$0x1] %vm2634, %v2613
    %vm2636 = vcmask 8200
    %2637 = vst.msk [vmem:[%s7] sm:$0x1] %vm2636, %v2633
    // Predicated region
    $region38: #{model_forward.1} parent=1 // pred_check
      _
    $region39: #{model_forward.1} parent=1 // pred_check_branch
      %2639 = sbr.rel (0) target = $region41
    $region40: #{model_forward.1} parent=1 // pred_region
      _
    $region41: #{model_forward.1} parent=1 // pred_fallthru
      _
    // Predicated region
    $region42: #{model_forward.1} parent=1 // pred_check
      _
    $region43: #{model_forward.1} parent=1 // pred_check_branch
      %2641 = sbr.rel (0) target = $region45
    $region44: #{model_forward.1} parent=1 // pred_region
      _
    $region45: #{model_forward.1} parent=1 // pred_fallthru
      _
    %2642 = vsyncpa [#allocation3], 1
    %2643 = vsyncpa [#allocation5], 1

</llo_original>
